<compile_context>
chip_gen: v6e
topology: v6e:2x2x1
jax: 0.10.0
libtpu: 0.0.40
codegen_flags: <defaults>
</compile_context>

<pallas_src>
import functools

import jax
import jax.numpy as jnp
from jax.experimental import pallas as pl
from jax.experimental.pallas import tpu as pltpu

LANE = 128
SUBLANE = 8


def _round_up(x, m):
    return ((x + m - 1) // m) * m


# ----------------------------- In-kernel LSTM cell -----------------------------

def _lstm_cell(x, h_prev, c_prev, w, b, hid_dim):
    """One LSTM cell step with a single fused MXU matmul.

    x:(B,in), h_prev/c_prev:(B,H), w:(in+H, 4H) = concat([W_ih; W_hh], 0), b:(1,4H).
    PyTorch gate order [i, f, g, o]; bias is (bias_ih + bias_hh).
    """
    xh = jnp.concatenate([x, h_prev], axis=-1)
    gates = jnp.dot(xh, w, preferred_element_type=jnp.float32) + b
    # Full-vreg nonlinearities (2 EUP ops over (B, 4H)), then lane slices for combine.
    sg = jax.nn.sigmoid(gates)
    tg = jnp.tanh(gates)
    H = hid_dim
    i_g = sg[:, 0 * H:1 * H]
    f_g = sg[:, 1 * H:2 * H]
    g_g = tg[:, 2 * H:3 * H]
    o_g = sg[:, 3 * H:4 * H]
    c_new = f_g * c_prev + i_g * g_g
    h_new = o_g * jnp.tanh(c_new)
    return h_new, c_new


# ----------------------------- Encoder kernel -----------------------------

def _make_encoder_kernel(n_layers, hid_dim):
    def kernel(*refs):
        # inputs: tok, emb_tbl, (W, b) * n_layers | outputs: h_out, c_out | scratch: h, c
        tok_ref, emb_ref = refs[0], refs[1]
        wb = refs[2:2 + 2 * n_layers]
        h_out_ref = refs[2 + 2 * n_layers]
        c_out_ref = refs[3 + 2 * n_layers]
        h_scr = refs[4 + 2 * n_layers]
        c_scr = refs[5 + 2 * n_layers]

        t = pl.program_id(0)

        @pl.when(t == 0)
        def _init():
            h_scr[...] = jnp.zeros_like(h_scr)
            c_scr[...] = jnp.zeros_like(c_scr)

        tok = tok_ref[0]                                        # (B, 1) int32
        B = tok.shape[0]
        vocab = emb_ref.shape[0]
        lane = jax.lax.broadcasted_iota(jnp.int32, (B, vocab), 1)
        onehot = (lane == tok).astype(jnp.float32)
        x = jnp.dot(onehot, emb_ref[...], preferred_element_type=jnp.float32)  # (B, E)

        for l in range(n_layers):
            w_ref, b_ref = wb[2 * l], wb[2 * l + 1]
            h_new, c_new = _lstm_cell(x, h_scr[l], c_scr[l], w_ref[...], b_ref[...], hid_dim)
            h_scr[l] = h_new
            c_scr[l] = c_new
            x = h_new

        @pl.when(t == pl.num_programs(0) - 1)
        def _finalize():
            h_out_ref[...] = h_scr[...]
            c_out_ref[...] = c_scr[...]

    return kernel


def run_encoder(src_tbe, emb_tbl, layers, hid_dim):
    """src_tbe: (Ts, B, 1) int32 tokens. Returns final (h, c), each (L, B, H)."""
    Ts, B, _ = src_tbe.shape
    L = len(layers)
    H = hid_dim

    in_specs = [
        pl.BlockSpec((1, B, 1), lambda t: (t, 0, 0)),           # per-step tokens
        pl.BlockSpec(emb_tbl.shape, lambda t: (0, 0)),          # VMEM-resident table
    ]
    args = [src_tbe, emb_tbl]
    for (w, b) in layers:
        in_specs.append(pl.BlockSpec(w.shape, lambda t: (0, 0)))
        in_specs.append(pl.BlockSpec(b.shape, lambda t: (0, 0)))
        args.extend([w, b])

    out_specs = (
        pl.BlockSpec((L, B, H), lambda t: (0, 0, 0)),
        pl.BlockSpec((L, B, H), lambda t: (0, 0, 0)),
    )
    out_shape = (
        jax.ShapeDtypeStruct((L, B, H), jnp.float32),
        jax.ShapeDtypeStruct((L, B, H), jnp.float32),
    )

    flops = Ts * (2 * B * emb_tbl.shape[0] * emb_tbl.shape[1]
                  + sum(2 * B * w.shape[0] * w.shape[1] for (w, _) in layers))
    bytes_accessed = (src_tbe.size * 4 + emb_tbl.size * 4
                      + sum(w.size * 4 + b.size * 4 for (w, b) in layers)
                      + 2 * L * B * H * 4)
    cost = pl.CostEstimate(flops=int(flops),
                           transcendentals=int(Ts * L * B * 5 * H),
                           bytes_accessed=int(bytes_accessed))

    return pl.pallas_call(
        _make_encoder_kernel(L, H),
        grid_spec=pltpu.PrefetchScalarGridSpec(
            num_scalar_prefetch=0,
            grid=(Ts,),
            in_specs=in_specs,
            out_specs=out_specs,
            scratch_shapes=[
                pltpu.VMEM((L, B, H), jnp.float32),
                pltpu.VMEM((L, B, H), jnp.float32),
            ],
        ),
        out_shape=out_shape,
        compiler_params=pltpu.CompilerParams(dimension_semantics=("arbitrary",)),
        cost_estimate=cost,
    )(*args)


# ----------------------------- Decoder kernel -----------------------------

def _make_decoder_kernel(n_layers, hid_dim):
    def kernel(*refs):
        # inputs: tok0, h0, c0, emb_tbl, (W, b) * L, fc_w, fc_b
        # outputs: logits_out, idx_out | scratch: h, c, tok
        tok0_ref, h0_ref, c0_ref, emb_ref = refs[0], refs[1], refs[2], refs[3]
        wb = refs[4:4 + 2 * n_layers]
        base = 4 + 2 * n_layers
        fc_w_ref, fc_b_ref = refs[base], refs[base + 1]
        logits_out_ref, idx_out_ref = refs[base + 2], refs[base + 3]
        h_scr, c_scr, tok_scr = refs[base + 4], refs[base + 5], refs[base + 6]

        t = pl.program_id(0)

        @pl.when(t == 0)
        def _init():
            h_scr[...] = h0_ref[...]
            c_scr[...] = c0_ref[...]
            tok_scr[...] = tok0_ref[...]

        # In-kernel embedding gather via one-hot MXU matmul (no XLA round-trip).
        tok = tok_scr[...]                                      # (B, 1) int32
        B = tok.shape[0]
        vocab = emb_ref.shape[0]
        lane = jax.lax.broadcasted_iota(jnp.int32, (B, vocab), 1)
        onehot = (lane == tok).astype(jnp.float32)
        x = jnp.dot(onehot, emb_ref[...], preferred_element_type=jnp.float32)  # (B, E)

        for l in range(n_layers):
            w_ref, b_ref = wb[2 * l], wb[2 * l + 1]
            h_new, c_new = _lstm_cell(x, h_scr[l], c_scr[l], w_ref[...], b_ref[...], hid_dim)
            h_scr[l] = h_new
            c_scr[l] = c_new
            x = h_new

        # Output projection (V padded to a lane multiple; padded bias = -inf).
        logits = (jnp.dot(x, fc_w_ref[...], preferred_element_type=jnp.float32)
                  + fc_b_ref[...])                               # (B, Vp)
        logits_out_ref[t] = logits

        Vp = logits.shape[-1]
        lane_v = jax.lax.broadcasted_iota(jnp.int32, logits.shape, 1)
        mx = jnp.max(logits, axis=-1, keepdims=True)
        # first index achieving the max (matches torch.topk(1) tie-breaking)
        idx = jnp.min(jnp.where(logits == mx, lane_v, Vp), axis=-1, keepdims=True)
        idx_out_ref[t] = idx
        tok_scr[...] = idx                                       # greedy feedback

    return kernel


def run_decoder(tok0, h0, c0, emb_tbl, layers, fc_w, fc_b, n_steps, hid_dim):
    """Greedy decode for n_steps tokens in one kernel.

    tok0:(B,1) int32; h0/c0:(L,B,H); fc_w:(H,Vp); fc_b:(1,Vp) (Vp lane-padded).
    Returns logits (n_steps, B, Vp) and argmax indices (n_steps, B, 1).
    """
    B = tok0.shape[0]
    L = len(layers)
    H = hid_dim
    Vp = fc_w.shape[1]

    in_specs = [
        pl.BlockSpec((B, 1), lambda t: (0, 0)),
        pl.BlockSpec((L, B, H), lambda t: (0, 0, 0)),
        pl.BlockSpec((L, B, H), lambda t: (0, 0, 0)),
        pl.BlockSpec(emb_tbl.shape, lambda t: (0, 0)),
    ]
    args = [tok0, h0, c0, emb_tbl]
    for (w, b) in layers:
        in_specs.append(pl.BlockSpec(w.shape, lambda t: (0, 0)))
        in_specs.append(pl.BlockSpec(b.shape, lambda t: (0, 0)))
        args.extend([w, b])
    in_specs.append(pl.BlockSpec(fc_w.shape, lambda t: (0, 0)))
    in_specs.append(pl.BlockSpec(fc_b.shape, lambda t: (0, 0)))
    args.extend([fc_w, fc_b])

    out_specs = (
        pl.BlockSpec((n_steps, B, Vp), lambda t: (0, 0, 0)),     # VMEM-resident, write row t
        pl.BlockSpec((n_steps, B, 1), lambda t: (0, 0, 0)),
    )
    out_shape = (
        jax.ShapeDtypeStruct((n_steps, B, Vp), jnp.float32),
        jax.ShapeDtypeStruct((n_steps, B, 1), jnp.int32),
    )

    flops = n_steps * (2 * B * emb_tbl.shape[0] * emb_tbl.shape[1]
                       + sum(2 * B * w.shape[0] * w.shape[1] for (w, _) in layers)
                       + 2 * B * H * Vp)
    bytes_accessed = (tok0.size * 4 + h0.size * 4 + c0.size * 4 + emb_tbl.size * 4
                      + sum(w.size * 4 + b.size * 4 for (w, b) in layers)
                      + fc_w.size * 4 + fc_b.size * 4
                      + n_steps * B * (Vp + 1) * 4)
    cost = pl.CostEstimate(flops=int(flops),
                           transcendentals=int(n_steps * L * B * 5 * H),
                           bytes_accessed=int(bytes_accessed))

    return pl.pallas_call(
        _make_decoder_kernel(L, H),
        grid_spec=pltpu.PrefetchScalarGridSpec(
            num_scalar_prefetch=0,
            grid=(n_steps,),
            in_specs=in_specs,
            out_specs=out_specs,
            scratch_shapes=[
                pltpu.VMEM((L, B, H), jnp.float32),
                pltpu.VMEM((L, B, H), jnp.float32),
                pltpu.VMEM((B, 1), jnp.int32),
            ],
        ),
        out_shape=out_shape,
        compiler_params=pltpu.CompilerParams(dimension_semantics=("arbitrary",)),
        cost_estimate=cost,
    )(*args)


# ----------------------------- Parameter setup -----------------------------

def init_params(key, input_dim, output_dim, emb_dim, hid_dim, n_layers):
    keys = iter(jax.random.split(key, 64))
    scale = 1.0 / jnp.sqrt(jnp.float32(hid_dim))

    def u(k, shape):
        return jax.random.uniform(k, shape, jnp.float32, -scale, scale)

    # fc weights padded to a lane-dense multiple of 128; padded bias columns = -inf
    vp = _round_up(output_dim, LANE)
    fc_w = u(next(keys), (hid_dim, output_dim))
    fc_b = u(next(keys), (1, output_dim))
    fc_w_pad = jnp.zeros((hid_dim, vp), jnp.float32).at[:, :output_dim].set(fc_w)
    fc_b_pad = jnp.full((1, vp), -1e30, jnp.float32).at[:, :output_dim].set(fc_b)

    params = {
        "enc_emb": jax.random.normal(next(keys), (input_dim, emb_dim), jnp.float32) * 0.1,
        "dec_emb": jax.random.normal(next(keys), (output_dim, emb_dim), jnp.float32) * 0.1,
        "enc_lstm": [],
        "dec_lstm": [],
        "fc_w": fc_w_pad,
        "fc_b": fc_b_pad,
    }
    for stack in ("enc_lstm", "dec_lstm"):
        for layer in range(n_layers):
            in_dim = emb_dim if layer == 0 else hid_dim
            w_ih = u(next(keys), (in_dim, 4 * hid_dim))
            w_hh = u(next(keys), (hid_dim, 4 * hid_dim))
            w = jnp.concatenate([w_ih, w_hh], axis=0)            # fused (in+H, 4H)
            b = u(next(keys), (1, 4 * hid_dim)) + u(next(keys), (1, 4 * hid_dim))
            params[stack].append((w, b))
    return params


# ----------------------------- Forward pass -----------------------------

def seq2seq_forward(params, src_tokens, tgt_tokens, hid_dim, n_layers):
    """Mirrors Seq2Seq.forward(input, target, teacher_forcing=False)."""
    B, _src_len = src_tokens.shape
    tgt_len = tgt_tokens.shape[1]
    V = params["dec_emb"].shape[0]

    # Pad batch to a full f32 sublane group (8 rows) for MXU/VPU utilization.
    BP = _round_up(max(B, SUBLANE), SUBLANE)
    pad = BP - B
    src_p = jnp.pad(src_tokens, ((0, pad), (0, 0)))              # padded rows use token 0
    tgt0_p = jnp.pad(tgt_tokens[:, 0:1], ((0, pad), (0, 0)))

    # ---- Encoder: one fused kernel over the entire source sequence ----
    src_tbe = jnp.transpose(src_p, (1, 0))[:, :, None].astype(jnp.int32)   # (Ts, BP, 1)
    enc_h, enc_c = run_encoder(src_tbe, params["enc_emb"], params["enc_lstm"], hid_dim)

    # ---- Decoder: one fused kernel over all greedy decode steps ----
    n_steps = tgt_len - 1
    logits_steps, idx_steps = run_decoder(
        tgt0_p.astype(jnp.int32), enc_h, enc_c, params["dec_emb"],
        params["dec_lstm"], params["fc_w"], params["fc_b"], n_steps, hid_dim)

    logits = jnp.transpose(logits_steps[:, :B, :V], (1, 0, 2))             # (B, Tt-1, V)
    idx = jnp.transpose(idx_steps[:, :B, 0], (1, 0)).astype(jnp.float32)   # (B, Tt-1)

    outputs = jnp.concatenate([jnp.zeros((B, 1, V), jnp.float32), logits], axis=1)
    outputs_idx = jnp.concatenate([jnp.zeros((B, 1), jnp.float32), idx], axis=1)
    return outputs_idx, outputs


# ----------------------------- Main -----------------------------

if __name__ == "__main__":
    INPUT_DIM = 20    # source vocab
    OUTPUT_DIM = 24   # target vocab
    EMB_DIM = 16
    HID_DIM = 32
    N_LAYERS = 2
    B = 2
    SRC_LEN = 8
    TGT_LEN = 8

    key = jax.random.PRNGKey(0)
    k_params, k_src, k_tgt = jax.random.split(key, 3)

    params = init_params(k_params, INPUT_DIM, OUTPUT_DIM, EMB_DIM, HID_DIM, N_LAYERS)
    src = jax.random.randint(k_src, (B, SRC_LEN), 0, INPUT_DIM, dtype=jnp.int32)
    tgt = jax.random.randint(k_tgt, (B, TGT_LEN), 0, OUTPUT_DIM, dtype=jnp.int32)

    fwd = jax.jit(functools.partial(seq2seq_forward, hid_dim=HID_DIM, n_layers=N_LAYERS))
    outputs_idx, outputs = fwd(params, src, tgt)
    jax.block_until_ready((outputs_idx, outputs))

    assert outputs.shape == (B, TGT_LEN, OUTPUT_DIM)
    assert outputs_idx.shape == (B, TGT_LEN)
    assert bool(jnp.all(jnp.isfinite(outputs)))
    assert bool(jnp.all((outputs_idx >= 0) & (outputs_idx < OUTPUT_DIM)))
    print("KERNEL_OK")
</pallas_src>

<mosaic_0001>
module attributes {stable_mosaic.version = 11 : i64} {
  func.func @kernel(%arg0: i32, %arg1: memref<8x1xi32, #tpu.memory_space<vmem>>, %arg2: memref<2x8x32xf32, #tpu.memory_space<vmem>>, %arg3: memref<2x8x32xf32, #tpu.memory_space<vmem>>, %arg4: memref<24x16xf32, #tpu.memory_space<vmem>>, %arg5: memref<48x128xf32, #tpu.memory_space<vmem>>, %arg6: memref<1x128xf32, #tpu.memory_space<vmem>>, %arg7: memref<64x128xf32, #tpu.memory_space<vmem>>, %arg8: memref<1x128xf32, #tpu.memory_space<vmem>>, %arg9: memref<32x128xf32, #tpu.memory_space<vmem>>, %arg10: memref<1x128xf32, #tpu.memory_space<vmem>>, %arg11: memref<7x8x128xf32, #tpu.memory_space<vmem>>, %arg12: memref<7x8x1xi32, #tpu.memory_space<vmem>>, %arg13: memref<2x8x32xf32, #tpu.memory_space<vmem>>, %arg14: memref<2x8x32xf32, #tpu.memory_space<vmem>>, %arg15: memref<8x1xi32, #tpu.memory_space<vmem>>) attributes {dimension_semantics = [#tpu.dimension_semantics<arbitrary>], iteration_bounds = array<i64: 7>, scalar_prefetch = 0 : i64, scratch_operands = 3 : i64, tpu.core_type = #tpu.core_type<tc>, window_params = [{pipeline_mode = #tpu.pipeline_mode<synchronous>, transform_indices = @transform_0, window_bounds = array<i64: 8, 1>}, {pipeline_mode = #tpu.pipeline_mode<synchronous>, transform_indices = @transform_1, window_bounds = array<i64: 2, 8, 32>}, {pipeline_mode = #tpu.pipeline_mode<synchronous>, transform_indices = @transform_2, window_bounds = array<i64: 2, 8, 32>}, {pipeline_mode = #tpu.pipeline_mode<synchronous>, transform_indices = @transform_3, window_bounds = array<i64: 24, 16>}, {pipeline_mode = #tpu.pipeline_mode<synchronous>, transform_indices = @transform_4, window_bounds = array<i64: 48, 128>}, {pipeline_mode = #tpu.pipeline_mode<synchronous>, transform_indices = @transform_5, window_bounds = array<i64: 1, 128>}, {pipeline_mode = #tpu.pipeline_mode<synchronous>, transform_indices = @transform_6, window_bounds = array<i64: 64, 128>}, {pipeline_mode = #tpu.pipeline_mode<synchronous>, transform_indices = @transform_7, window_bounds = array<i64: 1, 128>}, {pipeline_mode = #tpu.pipeline_mode<synchronous>, transform_indices = @transform_8, window_bounds = array<i64: 32, 128>}, {pipeline_mode = #tpu.pipeline_mode<synchronous>, transform_indices = @transform_9, window_bounds = array<i64: 1, 128>}, {pipeline_mode = #tpu.pipeline_mode<synchronous>, transform_indices = @transform_10, window_bounds = array<i64: 7, 8, 128>}, {pipeline_mode = #tpu.pipeline_mode<synchronous>, transform_indices = @transform_11, window_bounds = array<i64: 7, 8, 1>}]} {
    %c0_i32 = arith.constant 0 : i32
    %0 = arith.cmpi eq, %arg0, %c0_i32 : i32
    %1 = arith.extui %0 : i1 to i32
    %c0_i32_0 = arith.constant 0 : i32
    %2 = arith.cmpi ne, %1, %c0_i32_0 : i32
    scf.if %2 {
      %c0_52 = arith.constant 0 : index
      %c0_53 = arith.constant 0 : index
      %c0_54 = arith.constant 0 : index
      %96 = vector.load %arg2[%c0_52, %c0_53, %c0_54] : memref<2x8x32xf32, #tpu.memory_space<vmem>>, vector<2x8x32xf32>
      %c0_55 = arith.constant 0 : index
      %c0_56 = arith.constant 0 : index
      %c0_57 = arith.constant 0 : index
      %97 = vector.load %arg13[%c0_55, %c0_56, %c0_57] : memref<2x8x32xf32, #tpu.memory_space<vmem>>, vector<2x8x32xf32>
      tpu.vector_store %arg13[%c0_55, %c0_56, %c0_57], %96 {strides = array<i32>} : memref<2x8x32xf32, #tpu.memory_space<vmem>>, vector<2x8x32xf32>,
      %c0_58 = arith.constant 0 : index
      %c0_59 = arith.constant 0 : index
      %c0_60 = arith.constant 0 : index
      %98 = vector.load %arg3[%c0_58, %c0_59, %c0_60] : memref<2x8x32xf32, #tpu.memory_space<vmem>>, vector<2x8x32xf32>
      %c0_61 = arith.constant 0 : index
      %c0_62 = arith.constant 0 : index
      %c0_63 = arith.constant 0 : index
      %99 = vector.load %arg14[%c0_61, %c0_62, %c0_63] : memref<2x8x32xf32, #tpu.memory_space<vmem>>, vector<2x8x32xf32>
      tpu.vector_store %arg14[%c0_61, %c0_62, %c0_63], %98 {strides = array<i32>} : memref<2x8x32xf32, #tpu.memory_space<vmem>>, vector<2x8x32xf32>,
      %c0_64 = arith.constant 0 : index
      %c0_65 = arith.constant 0 : index
      %100 = vector.load %arg1[%c0_64, %c0_65] : memref<8x1xi32, #tpu.memory_space<vmem>>, vector<8x1xi32>
      %c0_66 = arith.constant 0 : index
      %c0_67 = arith.constant 0 : index
      %101 = vector.load %arg15[%c0_66, %c0_67] : memref<8x1xi32, #tpu.memory_space<vmem>>, vector<8x1xi32>
      tpu.vector_store %arg15[%c0_66, %c0_67], %100 {strides = array<i32>} : memref<8x1xi32, #tpu.memory_space<vmem>>, vector<8x1xi32>,
    } else {
    }
    %c0 = arith.constant 0 : index
    %c0_1 = arith.constant 0 : index
    %3 = vector.load %arg15[%c0, %c0_1] : memref<8x1xi32, #tpu.memory_space<vmem>>, vector<8x1xi32>
    %4 = tpu.iota {dimensions = array<i32: 1>} : vector<8x24xi32>
    %5 = vector.broadcast %3 : vector<8x1xi32> to vector<8x24xi32>
    %6 = arith.cmpi eq, %4, %5 : vector<8x24xi32>
    %7 = arith.extui %6 : vector<8x24xi1> to vector<8x24xi32>
    %8 = arith.sitofp %7 : vector<8x24xi32> to vector<8x24xf32>
    %c0_2 = arith.constant 0 : index
    %c0_3 = arith.constant 0 : index
    %9 = vector.load %arg4[%c0_2, %c0_3] : memref<24x16xf32, #tpu.memory_space<vmem>>, vector<24x16xf32>
    %cst = arith.constant dense<0.000000e+00> : vector<8x16xf32>
    %10 = tpu.matmul %8, %9, %cst {dimension_numbers = #tpu.dot_dimension_numbers<[1], [0], [0], [1], [0, 0, 1, 1], [], []>} : vector<8x24xf32>, vector<24x16xf32>, vector<8x16xf32> -> vector<8x16xf32>
    %c0_4 = arith.constant 0 : index
    %c0_5 = arith.constant 0 : index
    %c0_6 = arith.constant 0 : index
    %11 = vector.load %arg13[%c0_4, %c0_5, %c0_6] : memref<2x8x32xf32, #tpu.memory_space<vmem>>, vector<1x8x32xf32>
    %12 = vector.shape_cast %11 : vector<1x8x32xf32> to vector<8x32xf32>
    %c0_7 = arith.constant 0 : index
    %c0_8 = arith.constant 0 : index
    %c0_9 = arith.constant 0 : index
    %13 = vector.load %arg14[%c0_7, %c0_8, %c0_9] : memref<2x8x32xf32, #tpu.memory_space<vmem>>, vector<1x8x32xf32>
    %14 = vector.shape_cast %13 : vector<1x8x32xf32> to vector<8x32xf32>
    %c0_10 = arith.constant 0 : index
    %c0_11 = arith.constant 0 : index
    %15 = vector.load %arg5[%c0_10, %c0_11] : memref<48x128xf32, #tpu.memory_space<vmem>>, vector<48x128xf32>
    %c0_12 = arith.constant 0 : index
    %c0_13 = arith.constant 0 : index
    %16 = vector.load %arg6[%c0_12, %c0_13] : memref<1x128xf32, #tpu.memory_space<vmem>>, vector<1x128xf32>
    %17 = tpu.concatenate %10, %12 in 1 : vector<8x16xf32>, vector<8x32xf32> -> vector<8x48xf32>
    %cst_14 = arith.constant dense<0.000000e+00> : vector<8x128xf32>
    %18 = tpu.matmul %17, %15, %cst_14 {dimension_numbers = #tpu.dot_dimension_numbers<[1], [0], [0], [1], [0, 0, 1, 1], [], []>} : vector<8x48xf32>, vector<48x128xf32>, vector<8x128xf32> -> vector<8x128xf32>
    %19 = vector.broadcast %16 : vector<1x128xf32> to vector<8x128xf32>
    %20 = arith.addf %18, %19 : vector<8x128xf32>
    %21 = arith.negf %20 : vector<8x128xf32>
    %22 = math.exp %21 : vector<8x128xf32>
    %cst_15 = arith.constant 1.000000e+00 : f32
    %23 = vector.broadcast %cst_15 : f32 to vector<8x128xf32>
    %24 = arith.addf %23, %22 : vector<8x128xf32>
    %25 = arith.divf %23, %24 : vector<8x128xf32>
    %26 = math.tanh %20 : vector<8x128xf32>
    %27 = vector.extract_strided_slice %25 {offsets = [0, 0], sizes = [8, 32], strides = [1, 1]} : vector<8x128xf32> to vector<8x32xf32>
    %28 = vector.extract_strided_slice %25 {offsets = [0, 32], sizes = [8, 32], strides = [1, 1]} : vector<8x128xf32> to vector<8x32xf32>
    %29 = vector.extract_strided_slice %26 {offsets = [0, 64], sizes = [8, 32], strides = [1, 1]} : vector<8x128xf32> to vector<8x32xf32>
    %30 = vector.extract_strided_slice %25 {offsets = [0, 96], sizes = [8, 32], strides = [1, 1]} : vector<8x128xf32> to vector<8x32xf32>
    %31 = arith.mulf %28, %14 : vector<8x32xf32>
    %32 = arith.mulf %27, %29 : vector<8x32xf32>
    %33 = arith.addf %31, %32 : vector<8x32xf32>
    %34 = math.tanh %33 : vector<8x32xf32>
    %35 = arith.mulf %30, %34 : vector<8x32xf32>
    %c0_16 = arith.constant 0 : index
    %c0_17 = arith.constant 0 : index
    %c0_18 = arith.constant 0 : index
    %36 = vector.load %arg13[%c0_16, %c0_17, %c0_18] : memref<2x8x32xf32, #tpu.memory_space<vmem>>, vector<1x8x32xf32>
    %37 = vector.shape_cast %36 : vector<1x8x32xf32> to vector<8x32xf32>
    %38 = vector.shape_cast %35 : vector<8x32xf32> to vector<1x8x32xf32>
    tpu.vector_store %arg13[%c0_16, %c0_17, %c0_18], %38 {strides = array<i32>} : memref<2x8x32xf32, #tpu.memory_space<vmem>>, vector<1x8x32xf32>,
    %c0_19 = arith.constant 0 : index
    %c0_20 = arith.constant 0 : index
    %c0_21 = arith.constant 0 : index
    %39 = vector.load %arg14[%c0_19, %c0_20, %c0_21] : memref<2x8x32xf32, #tpu.memory_space<vmem>>, vector<1x8x32xf32>
    %40 = vector.shape_cast %39 : vector<1x8x32xf32> to vector<8x32xf32>
    %41 = vector.shape_cast %33 : vector<8x32xf32> to vector<1x8x32xf32>
    tpu.vector_store %arg14[%c0_19, %c0_20, %c0_21], %41 {strides = array<i32>} : memref<2x8x32xf32, #tpu.memory_space<vmem>>, vector<1x8x32xf32>,
    %c1 = arith.constant 1 : index
    %c0_22 = arith.constant 0 : index
    %c0_23 = arith.constant 0 : index
    %42 = vector.load %arg13[%c1, %c0_22, %c0_23] : memref<2x8x32xf32, #tpu.memory_space<vmem>>, vector<1x8x32xf32>
    %43 = vector.shape_cast %42 : vector<1x8x32xf32> to vector<8x32xf32>
    %c1_24 = arith.constant 1 : index
    %c0_25 = arith.constant 0 : index
    %c0_26 = arith.constant 0 : index
    %44 = vector.load %arg14[%c1_24, %c0_25, %c0_26] : memref<2x8x32xf32, #tpu.memory_space<vmem>>, vector<1x8x32xf32>
    %45 = vector.shape_cast %44 : vector<1x8x32xf32> to vector<8x32xf32>
    %c0_27 = arith.constant 0 : index
    %c0_28 = arith.constant 0 : index
    %46 = vector.load %arg7[%c0_27, %c0_28] : memref<64x128xf32, #tpu.memory_space<vmem>>, vector<64x128xf32>
    %c0_29 = arith.constant 0 : index
    %c0_30 = arith.constant 0 : index
    %47 = vector.load %arg8[%c0_29, %c0_30] : memref<1x128xf32, #tpu.memory_space<vmem>>, vector<1x128xf32>
    %48 = tpu.concatenate %35, %43 in 1 : vector<8x32xf32>, vector<8x32xf32> -> vector<8x64xf32>
    %cst_31 = arith.constant dense<0.000000e+00> : vector<8x128xf32>
    %49 = tpu.matmul %48, %46, %cst_31 {dimension_numbers = #tpu.dot_dimension_numbers<[1], [0], [0], [1], [0, 0, 1, 1], [], []>} : vector<8x64xf32>, vector<64x128xf32>, vector<8x128xf32> -> vector<8x128xf32>
    %50 = vector.broadcast %47 : vector<1x128xf32> to vector<8x128xf32>
    %51 = arith.addf %49, %50 : vector<8x128xf32>
    %52 = arith.negf %51 : vector<8x128xf32>
    %53 = math.exp %52 : vector<8x128xf32>
    %cst_32 = arith.constant 1.000000e+00 : f32
    %54 = vector.broadcast %cst_32 : f32 to vector<8x128xf32>
    %55 = arith.addf %54, %53 : vector<8x128xf32>
    %56 = arith.divf %54, %55 : vector<8x128xf32>
    %57 = math.tanh %51 : vector<8x128xf32>
    %58 = vector.extract_strided_slice %56 {offsets = [0, 0], sizes = [8, 32], strides = [1, 1]} : vector<8x128xf32> to vector<8x32xf32>
    %59 = vector.extract_strided_slice %56 {offsets = [0, 32], sizes = [8, 32], strides = [1, 1]} : vector<8x128xf32> to vector<8x32xf32>
    %60 = vector.extract_strided_slice %57 {offsets = [0, 64], sizes = [8, 32], strides = [1, 1]} : vector<8x128xf32> to vector<8x32xf32>
    %61 = vector.extract_strided_slice %56 {offsets = [0, 96], sizes = [8, 32], strides = [1, 1]} : vector<8x128xf32> to vector<8x32xf32>
    %62 = arith.mulf %59, %45 : vector<8x32xf32>
    %63 = arith.mulf %58, %60 : vector<8x32xf32>
    %64 = arith.addf %62, %63 : vector<8x32xf32>
    %65 = math.tanh %64 : vector<8x32xf32>
    %66 = arith.mulf %61, %65 : vector<8x32xf32>
    %c1_33 = arith.constant 1 : index
    %c0_34 = arith.constant 0 : index
    %c0_35 = arith.constant 0 : index
    %67 = vector.load %arg13[%c1_33, %c0_34, %c0_35] : memref<2x8x32xf32, #tpu.memory_space<vmem>>, vector<1x8x32xf32>
    %68 = vector.shape_cast %67 : vector<1x8x32xf32> to vector<8x32xf32>
    %69 = vector.shape_cast %66 : vector<8x32xf32> to vector<1x8x32xf32>
    tpu.vector_store %arg13[%c1_33, %c0_34, %c0_35], %69 {strides = array<i32>} : memref<2x8x32xf32, #tpu.memory_space<vmem>>, vector<1x8x32xf32>,
    %c1_36 = arith.constant 1 : index
    %c0_37 = arith.constant 0 : index
    %c0_38 = arith.constant 0 : index
    %70 = vector.load %arg14[%c1_36, %c0_37, %c0_38] : memref<2x8x32xf32, #tpu.memory_space<vmem>>, vector<1x8x32xf32>
    %71 = vector.shape_cast %70 : vector<1x8x32xf32> to vector<8x32xf32>
    %72 = vector.shape_cast %64 : vector<8x32xf32> to vector<1x8x32xf32>
    tpu.vector_store %arg14[%c1_36, %c0_37, %c0_38], %72 {strides = array<i32>} : memref<2x8x32xf32, #tpu.memory_space<vmem>>, vector<1x8x32xf32>,
    %c0_39 = arith.constant 0 : index
    %c0_40 = arith.constant 0 : index
    %73 = vector.load %arg9[%c0_39, %c0_40] : memref<32x128xf32, #tpu.memory_space<vmem>>, vector<32x128xf32>
    %cst_41 = arith.constant dense<0.000000e+00> : vector<8x128xf32>
    %74 = tpu.matmul %66, %73, %cst_41 {dimension_numbers = #tpu.dot_dimension_numbers<[1], [0], [0], [1], [0, 0, 1, 1], [], []>} : vector<8x32xf32>, vector<32x128xf32>, vector<8x128xf32> -> vector<8x128xf32>
    %c0_42 = arith.constant 0 : index
    %c0_43 = arith.constant 0 : index
    %75 = vector.load %arg10[%c0_42, %c0_43] : memref<1x128xf32, #tpu.memory_space<vmem>>, vector<1x128xf32>
    %76 = vector.broadcast %75 : vector<1x128xf32> to vector<8x128xf32>
    %77 = arith.addf %74, %76 : vector<8x128xf32>
    %78 = arith.index_cast %arg0 : i32 to index
    %c0_44 = arith.constant 0 : index
    %c0_45 = arith.constant 0 : index
    %79 = vector.load %arg11[%78, %c0_44, %c0_45] : memref<7x8x128xf32, #tpu.memory_space<vmem>>, vector<1x8x128xf32>
    %80 = vector.shape_cast %79 : vector<1x8x128xf32> to vector<8x128xf32>
    %81 = vector.shape_cast %77 : vector<8x128xf32> to vector<1x8x128xf32>
    tpu.vector_store %arg11[%78, %c0_44, %c0_45], %81 {strides = array<i32>} : memref<7x8x128xf32, #tpu.memory_space<vmem>>, vector<1x8x128xf32>,
    %82 = tpu.iota {dimensions = array<i32: 1>} : vector<8x128xi32>
    %cst_46 = arith.constant dense<0xFF800000> : vector<8xf32>
    %83 = vector.multi_reduction <maximumf>, %77, %cst_46 [1] : vector<8x128xf32> to vector<8xf32>
    %84 = vector.shape_cast %83 : vector<8xf32> to vector<8x1xf32>
    %85 = vector.broadcast %84 : vector<8x1xf32> to vector<8x128xf32>
    %86 = arith.cmpf oeq, %77, %85 : vector<8x128xf32>
    %c128_i32 = arith.constant 128 : i32
    %87 = vector.broadcast %c128_i32 : i32 to vector<8x128xi32>
    %88 = arith.select %86, %82, %87 : vector<8x128xi1>, vector<8x128xi32>
    %cst_47 = arith.constant dense<2147483647> : vector<8xi32>
    %89 = vector.multi_reduction <minsi>, %88, %cst_47 [1] : vector<8x128xi32> to vector<8xi32>
    %90 = vector.shape_cast %89 : vector<8xi32> to vector<8x1xi32>
    %91 = arith.index_cast %arg0 : i32 to index
    %c0_48 = arith.constant 0 : index
    %c0_49 = arith.constant 0 : index
    %92 = vector.load %arg12[%91, %c0_48, %c0_49] : memref<7x8x1xi32, #tpu.memory_space<vmem>>, vector<1x8x1xi32>
    %93 = vector.shape_cast %92 : vector<1x8x1xi32> to vector<8x1xi32>
    %94 = vector.shape_cast %90 : vector<8x1xi32> to vector<1x8x1xi32>
    tpu.vector_store %arg12[%91, %c0_48, %c0_49], %94 {strides = array<i32>} : memref<7x8x1xi32, #tpu.memory_space<vmem>>, vector<1x8x1xi32>,
    %c0_50 = arith.constant 0 : index
    %c0_51 = arith.constant 0 : index
    %95 = vector.load %arg15[%c0_50, %c0_51] : memref<8x1xi32, #tpu.memory_space<vmem>>, vector<8x1xi32>
    tpu.vector_store %arg15[%c0_50, %c0_51], %90 {strides = array<i32>} : memref<8x1xi32, #tpu.memory_space<vmem>>, vector<8x1xi32>,
    return
  }
  func.func @transform_0(%arg0: i32) -> (i32, i32) {
    %c0_i32 = arith.constant 0 : i32
    %c0_i32_0 = arith.constant 0 : i32
    %c0_i32_1 = arith.constant 0 : i32
    return %c0_i32, %c0_i32_0 : i32, i32
  }
  func.func @transform_1(%arg0: i32) -> (i32, i32, i32) {
    %c0_i32 = arith.constant 0 : i32
    %c0_i32_0 = arith.constant 0 : i32
    %c0_i32_1 = arith.constant 0 : i32
    %c0_i32_2 = arith.constant 0 : i32
    return %c0_i32, %c0_i32_0, %c0_i32_1 : i32, i32, i32
  }
  func.func @transform_2(%arg0: i32) -> (i32, i32, i32) {
    %c0_i32 = arith.constant 0 : i32
    %c0_i32_0 = arith.constant 0 : i32
    %c0_i32_1 = arith.constant 0 : i32
    %c0_i32_2 = arith.constant 0 : i32
    return %c0_i32, %c0_i32_0, %c0_i32_1 : i32, i32, i32
  }
  func.func @transform_3(%arg0: i32) -> (i32, i32) {
    %c0_i32 = arith.constant 0 : i32
    %c0_i32_0 = arith.constant 0 : i32
    %c0_i32_1 = arith.constant 0 : i32
    return %c0_i32, %c0_i32_0 : i32, i32
  }
  func.func @transform_4(%arg0: i32) -> (i32, i32) {
    %c0_i32 = arith.constant 0 : i32
    %c0_i32_0 = arith.constant 0 : i32
    %c0_i32_1 = arith.constant 0 : i32
    return %c0_i32, %c0_i32_0 : i32, i32
  }
  func.func @transform_5(%arg0: i32) -> (i32, i32) {
    %c0_i32 = arith.constant 0 : i32
    %c0_i32_0 = arith.constant 0 : i32
    %c0_i32_1 = arith.constant 0 : i32
    return %c0_i32, %c0_i32_0 : i32, i32
  }
  func.func @transform_6(%arg0: i32) -> (i32, i32) {
    %c0_i32 = arith.constant 0 : i32
    %c0_i32_0 = arith.constant 0 : i32
    %c0_i32_1 = arith.constant 0 : i32
    return %c0_i32, %c0_i32_0 : i32, i32
  }
  func.func @transform_7(%arg0: i32) -> (i32, i32) {
    %c0_i32 = arith.constant 0 : i32
    %c0_i32_0 = arith.constant 0 : i32
    %c0_i32_1 = arith.constant 0 : i32
    return %c0_i32, %c0_i32_0 : i32, i32
  }
  func.func @transform_8(%arg0: i32) -> (i32, i32) {
    %c0_i32 = arith.constant 0 : i32
    %c0_i32_0 = arith.constant 0 : i32
    %c0_i32_1 = arith.constant 0 : i32
    return %c0_i32, %c0_i32_0 : i32, i32
  }
  func.func @transform_9(%arg0: i32) -> (i32, i32) {
    %c0_i32 = arith.constant 0 : i32
    %c0_i32_0 = arith.constant 0 : i32
    %c0_i32_1 = arith.constant 0 : i32
    return %c0_i32, %c0_i32_0 : i32, i32
  }
  func.func @transform_10(%arg0: i32) -> (i32, i32, i32) {
    %c0_i32 = arith.constant 0 : i32
    %c0_i32_0 = arith.constant 0 : i32
    %c0_i32_1 = arith.constant 0 : i32
    %c0_i32_2 = arith.constant 0 : i32
    return %c0_i32, %c0_i32_0, %c0_i32_1 : i32, i32, i32
  }
  func.func @transform_11(%arg0: i32) -> (i32, i32, i32) {
    %c0_i32 = arith.constant 0 : i32
    %c0_i32_0 = arith.constant 0 : i32
    %c0_i32_1 = arith.constant 0 : i32
    %c0_i32_2 = arith.constant 0 : i32
    return %c0_i32, %c0_i32_0, %c0_i32_1 : i32, i32, i32
  }
}

module attributes {stable_mosaic.version = 11 : i64} {
  func.func @kernel(%arg0: i32, %arg1: memref<1x8x1xi32, #tpu.memory_space<vmem>>, %arg2: memref<20x16xf32, #tpu.memory_space<vmem>>, %arg3: memref<48x128xf32, #tpu.memory_space<vmem>>, %arg4: memref<1x128xf32, #tpu.memory_space<vmem>>, %arg5: memref<64x128xf32, #tpu.memory_space<vmem>>, %arg6: memref<1x128xf32, #tpu.memory_space<vmem>>, %arg7: memref<2x8x32xf32, #tpu.memory_space<vmem>>, %arg8: memref<2x8x32xf32, #tpu.memory_space<vmem>>, %arg9: memref<2x8x32xf32, #tpu.memory_space<vmem>>, %arg10: memref<2x8x32xf32, #tpu.memory_space<vmem>>) attributes {dimension_semantics = [#tpu.dimension_semantics<arbitrary>], iteration_bounds = array<i64: 8>, scalar_prefetch = 0 : i64, scratch_operands = 2 : i64, tpu.core_type = #tpu.core_type<tc>, window_params = [{transform_indices = @transform_0, window_bounds = array<i64: 1, 8, 1>}, {pipeline_mode = #tpu.pipeline_mode<synchronous>, transform_indices = @transform_1, window_bounds = array<i64: 20, 16>}, {pipeline_mode = #tpu.pipeline_mode<synchronous>, transform_indices = @transform_2, window_bounds = array<i64: 48, 128>}, {pipeline_mode = #tpu.pipeline_mode<synchronous>, transform_indices = @transform_3, window_bounds = array<i64: 1, 128>}, {pipeline_mode = #tpu.pipeline_mode<synchronous>, transform_indices = @transform_4, window_bounds = array<i64: 64, 128>}, {pipeline_mode = #tpu.pipeline_mode<synchronous>, transform_indices = @transform_5, window_bounds = array<i64: 1, 128>}, {pipeline_mode = #tpu.pipeline_mode<synchronous>, transform_indices = @transform_6, window_bounds = array<i64: 2, 8, 32>}, {pipeline_mode = #tpu.pipeline_mode<synchronous>, transform_indices = @transform_7, window_bounds = array<i64: 2, 8, 32>}]} {
    %c0_i32 = arith.constant 0 : i32
    %0 = arith.cmpi eq, %arg0, %c0_i32 : i32
    %1 = arith.extui %0 : i1 to i32
    %c0_i32_0 = arith.constant 0 : i32
    %2 = arith.cmpi ne, %1, %c0_i32_0 : i32
    scf.if %2 {
      %cst_41 = arith.constant 0.000000e+00 : f32
      %77 = vector.broadcast %cst_41 : f32 to vector<2x8x32xf32>
      %c0_42 = arith.constant 0 : index
      %c0_43 = arith.constant 0 : index
      %c0_44 = arith.constant 0 : index
      %78 = vector.load %arg9[%c0_42, %c0_43, %c0_44] : memref<2x8x32xf32, #tpu.memory_space<vmem>>, vector<2x8x32xf32>
      tpu.vector_store %arg9[%c0_42, %c0_43, %c0_44], %77 {strides = array<i32>} : memref<2x8x32xf32, #tpu.memory_space<vmem>>, vector<2x8x32xf32>,
      %cst_45 = arith.constant 0.000000e+00 : f32
      %79 = vector.broadcast %cst_45 : f32 to vector<2x8x32xf32>
      %c0_46 = arith.constant 0 : index
      %c0_47 = arith.constant 0 : index
      %c0_48 = arith.constant 0 : index
      %80 = vector.load %arg10[%c0_46, %c0_47, %c0_48] : memref<2x8x32xf32, #tpu.memory_space<vmem>>, vector<2x8x32xf32>
      tpu.vector_store %arg10[%c0_46, %c0_47, %c0_48], %79 {strides = array<i32>} : memref<2x8x32xf32, #tpu.memory_space<vmem>>, vector<2x8x32xf32>,
    } else {
    }
    %c0 = arith.constant 0 : index
    %c0_1 = arith.constant 0 : index
    %c0_2 = arith.constant 0 : index
    %3 = vector.load %arg1[%c0, %c0_1, %c0_2] : memref<1x8x1xi32, #tpu.memory_space<vmem>>, vector<1x8x1xi32>
    %4 = vector.shape_cast %3 : vector<1x8x1xi32> to vector<8x1xi32>
    %5 = tpu.iota {dimensions = array<i32: 1>} : vector<8x20xi32>
    %6 = vector.broadcast %4 : vector<8x1xi32> to vector<8x20xi32>
    %7 = arith.cmpi eq, %5, %6 : vector<8x20xi32>
    %8 = arith.extui %7 : vector<8x20xi1> to vector<8x20xi32>
    %9 = arith.sitofp %8 : vector<8x20xi32> to vector<8x20xf32>
    %c0_3 = arith.constant 0 : index
    %c0_4 = arith.constant 0 : index
    %10 = vector.load %arg2[%c0_3, %c0_4] : memref<20x16xf32, #tpu.memory_space<vmem>>, vector<20x16xf32>
    %cst = arith.constant dense<0.000000e+00> : vector<8x16xf32>
    %11 = tpu.matmul %9, %10, %cst {dimension_numbers = #tpu.dot_dimension_numbers<[1], [0], [0], [1], [0, 0, 1, 1], [], []>} : vector<8x20xf32>, vector<20x16xf32>, vector<8x16xf32> -> vector<8x16xf32>
    %c0_5 = arith.constant 0 : index
    %c0_6 = arith.constant 0 : index
    %c0_7 = arith.constant 0 : index
    %12 = vector.load %arg9[%c0_5, %c0_6, %c0_7] : memref<2x8x32xf32, #tpu.memory_space<vmem>>, vector<1x8x32xf32>
    %13 = vector.shape_cast %12 : vector<1x8x32xf32> to vector<8x32xf32>
    %c0_8 = arith.constant 0 : index
    %c0_9 = arith.constant 0 : index
    %c0_10 = arith.constant 0 : index
    %14 = vector.load %arg10[%c0_8, %c0_9, %c0_10] : memref<2x8x32xf32, #tpu.memory_space<vmem>>, vector<1x8x32xf32>
    %15 = vector.shape_cast %14 : vector<1x8x32xf32> to vector<8x32xf32>
    %c0_11 = arith.constant 0 : index
    %c0_12 = arith.constant 0 : index
    %16 = vector.load %arg3[%c0_11, %c0_12] : memref<48x128xf32, #tpu.memory_space<vmem>>, vector<48x128xf32>
    %c0_13 = arith.constant 0 : index
    %c0_14 = arith.constant 0 : index
    %17 = vector.load %arg4[%c0_13, %c0_14] : memref<1x128xf32, #tpu.memory_space<vmem>>, vector<1x128xf32>
    %18 = tpu.concatenate %11, %13 in 1 : vector<8x16xf32>, vector<8x32xf32> -> vector<8x48xf32>
    %cst_15 = arith.constant dense<0.000000e+00> : vector<8x128xf32>
    %19 = tpu.matmul %18, %16, %cst_15 {dimension_numbers = #tpu.dot_dimension_numbers<[1], [0], [0], [1], [0, 0, 1, 1], [], []>} : vector<8x48xf32>, vector<48x128xf32>, vector<8x128xf32> -> vector<8x128xf32>
    %20 = vector.broadcast %17 : vector<1x128xf32> to vector<8x128xf32>
    %21 = arith.addf %19, %20 : vector<8x128xf32>
    %22 = arith.negf %21 : vector<8x128xf32>
    %23 = math.exp %22 : vector<8x128xf32>
    %cst_16 = arith.constant 1.000000e+00 : f32
    %24 = vector.broadcast %cst_16 : f32 to vector<8x128xf32>
    %25 = arith.addf %24, %23 : vector<8x128xf32>
    %26 = arith.divf %24, %25 : vector<8x128xf32>
    %27 = math.tanh %21 : vector<8x128xf32>
    %28 = vector.extract_strided_slice %26 {offsets = [0, 0], sizes = [8, 32], strides = [1, 1]} : vector<8x128xf32> to vector<8x32xf32>
    %29 = vector.extract_strided_slice %26 {offsets = [0, 32], sizes = [8, 32], strides = [1, 1]} : vector<8x128xf32> to vector<8x32xf32>
    %30 = vector.extract_strided_slice %27 {offsets = [0, 64], sizes = [8, 32], strides = [1, 1]} : vector<8x128xf32> to vector<8x32xf32>
    %31 = vector.extract_strided_slice %26 {offsets = [0, 96], sizes = [8, 32], strides = [1, 1]} : vector<8x128xf32> to vector<8x32xf32>
    %32 = arith.mulf %29, %15 : vector<8x32xf32>
    %33 = arith.mulf %28, %30 : vector<8x32xf32>
    %34 = arith.addf %32, %33 : vector<8x32xf32>
    %35 = math.tanh %34 : vector<8x32xf32>
    %36 = arith.mulf %31, %35 : vector<8x32xf32>
    %c0_17 = arith.constant 0 : index
    %c0_18 = arith.constant 0 : index
    %c0_19 = arith.constant 0 : index
    %37 = vector.load %arg9[%c0_17, %c0_18, %c0_19] : memref<2x8x32xf32, #tpu.memory_space<vmem>>, vector<1x8x32xf32>
    %38 = vector.shape_cast %37 : vector<1x8x32xf32> to vector<8x32xf32>
    %39 = vector.shape_cast %36 : vector<8x32xf32> to vector<1x8x32xf32>
    tpu.vector_store %arg9[%c0_17, %c0_18, %c0_19], %39 {strides = array<i32>} : memref<2x8x32xf32, #tpu.memory_space<vmem>>, vector<1x8x32xf32>,
    %c0_20 = arith.constant 0 : index
    %c0_21 = arith.constant 0 : index
    %c0_22 = arith.constant 0 : index
    %40 = vector.load %arg10[%c0_20, %c0_21, %c0_22] : memref<2x8x32xf32, #tpu.memory_space<vmem>>, vector<1x8x32xf32>
    %41 = vector.shape_cast %40 : vector<1x8x32xf32> to vector<8x32xf32>
    %42 = vector.shape_cast %34 : vector<8x32xf32> to vector<1x8x32xf32>
    tpu.vector_store %arg10[%c0_20, %c0_21, %c0_22], %42 {strides = array<i32>} : memref<2x8x32xf32, #tpu.memory_space<vmem>>, vector<1x8x32xf32>,
    %c1 = arith.constant 1 : index
    %c0_23 = arith.constant 0 : index
    %c0_24 = arith.constant 0 : index
    %43 = vector.load %arg9[%c1, %c0_23, %c0_24] : memref<2x8x32xf32, #tpu.memory_space<vmem>>, vector<1x8x32xf32>
    %44 = vector.shape_cast %43 : vector<1x8x32xf32> to vector<8x32xf32>
    %c1_25 = arith.constant 1 : index
    %c0_26 = arith.constant 0 : index
    %c0_27 = arith.constant 0 : index
    %45 = vector.load %arg10[%c1_25, %c0_26, %c0_27] : memref<2x8x32xf32, #tpu.memory_space<vmem>>, vector<1x8x32xf32>
    %46 = vector.shape_cast %45 : vector<1x8x32xf32> to vector<8x32xf32>
    %c0_28 = arith.constant 0 : index
    %c0_29 = arith.constant 0 : index
    %47 = vector.load %arg5[%c0_28, %c0_29] : memref<64x128xf32, #tpu.memory_space<vmem>>, vector<64x128xf32>
    %c0_30 = arith.constant 0 : index
    %c0_31 = arith.constant 0 : index
    %48 = vector.load %arg6[%c0_30, %c0_31] : memref<1x128xf32, #tpu.memory_space<vmem>>, vector<1x128xf32>
    %49 = tpu.concatenate %36, %44 in 1 : vector<8x32xf32>, vector<8x32xf32> -> vector<8x64xf32>
    %cst_32 = arith.constant dense<0.000000e+00> : vector<8x128xf32>
    %50 = tpu.matmul %49, %47, %cst_32 {dimension_numbers = #tpu.dot_dimension_numbers<[1], [0], [0], [1], [0, 0, 1, 1], [], []>} : vector<8x64xf32>, vector<64x128xf32>, vector<8x128xf32> -> vector<8x128xf32>
    %51 = vector.broadcast %48 : vector<1x128xf32> to vector<8x128xf32>
    %52 = arith.addf %50, %51 : vector<8x128xf32>
    %53 = arith.negf %52 : vector<8x128xf32>
    %54 = math.exp %53 : vector<8x128xf32>
    %cst_33 = arith.constant 1.000000e+00 : f32
    %55 = vector.broadcast %cst_33 : f32 to vector<8x128xf32>
    %56 = arith.addf %55, %54 : vector<8x128xf32>
    %57 = arith.divf %55, %56 : vector<8x128xf32>
    %58 = math.tanh %52 : vector<8x128xf32>
    %59 = vector.extract_strided_slice %57 {offsets = [0, 0], sizes = [8, 32], strides = [1, 1]} : vector<8x128xf32> to vector<8x32xf32>
    %60 = vector.extract_strided_slice %57 {offsets = [0, 32], sizes = [8, 32], strides = [1, 1]} : vector<8x128xf32> to vector<8x32xf32>
    %61 = vector.extract_strided_slice %58 {offsets = [0, 64], sizes = [8, 32], strides = [1, 1]} : vector<8x128xf32> to vector<8x32xf32>
    %62 = vector.extract_strided_slice %57 {offsets = [0, 96], sizes = [8, 32], strides = [1, 1]} : vector<8x128xf32> to vector<8x32xf32>
    %63 = arith.mulf %60, %46 : vector<8x32xf32>
    %64 = arith.mulf %59, %61 : vector<8x32xf32>
    %65 = arith.addf %63, %64 : vector<8x32xf32>
    %66 = math.tanh %65 : vector<8x32xf32>
    %67 = arith.mulf %62, %66 : vector<8x32xf32>
    %c1_34 = arith.constant 1 : index
    %c0_35 = arith.constant 0 : index
    %c0_36 = arith.constant 0 : index
    %68 = vector.load %arg9[%c1_34, %c0_35, %c0_36] : memref<2x8x32xf32, #tpu.memory_space<vmem>>, vector<1x8x32xf32>
    %69 = vector.shape_cast %68 : vector<1x8x32xf32> to vector<8x32xf32>
    %70 = vector.shape_cast %67 : vector<8x32xf32> to vector<1x8x32xf32>
    tpu.vector_store %arg9[%c1_34, %c0_35, %c0_36], %70 {strides = array<i32>} : memref<2x8x32xf32, #tpu.memory_space<vmem>>, vector<1x8x32xf32>,
    %c1_37 = arith.constant 1 : index
    %c0_38 = arith.constant 0 : index
    %c0_39 = arith.constant 0 : index
    %71 = vector.load %arg10[%c1_37, %c0_38, %c0_39] : memref<2x8x32xf32, #tpu.memory_space<vmem>>, vector<1x8x32xf32>
    %72 = vector.shape_cast %71 : vector<1x8x32xf32> to vector<8x32xf32>
    %73 = vector.shape_cast %65 : vector<8x32xf32> to vector<1x8x32xf32>
    tpu.vector_store %arg10[%c1_37, %c0_38, %c0_39], %73 {strides = array<i32>} : memref<2x8x32xf32, #tpu.memory_space<vmem>>, vector<1x8x32xf32>,
    %c7_i32 = arith.constant 7 : i32
    %74 = arith.cmpi eq, %arg0, %c7_i32 : i32
    %75 = arith.extui %74 : i1 to i32
    %c0_i32_40 = arith.constant 0 : i32
    %76 = arith.cmpi ne, %75, %c0_i32_40 : i32
    scf.if %76 {
      %c0_41 = arith.constant 0 : index
      %c0_42 = arith.constant 0 : index
      %c0_43 = arith.constant 0 : index
      %77 = vector.load %arg9[%c0_41, %c0_42, %c0_43] : memref<2x8x32xf32, #tpu.memory_space<vmem>>, vector<2x8x32xf32>
      %c0_44 = arith.constant 0 : index
      %c0_45 = arith.constant 0 : index
      %c0_46 = arith.constant 0 : index
      %78 = vector.load %arg7[%c0_44, %c0_45, %c0_46] : memref<2x8x32xf32, #tpu.memory_space<vmem>>, vector<2x8x32xf32>
      tpu.vector_store %arg7[%c0_44, %c0_45, %c0_46], %77 {strides = array<i32>} : memref<2x8x32xf32, #tpu.memory_space<vmem>>, vector<2x8x32xf32>,
      %c0_47 = arith.constant 0 : index
      %c0_48 = arith.constant 0 : index
      %c0_49 = arith.constant 0 : index
      %79 = vector.load %arg10[%c0_47, %c0_48, %c0_49] : memref<2x8x32xf32, #tpu.memory_space<vmem>>, vector<2x8x32xf32>
      %c0_50 = arith.constant 0 : index
      %c0_51 = arith.constant 0 : index
      %c0_52 = arith.constant 0 : index
      %80 = vector.load %arg8[%c0_50, %c0_51, %c0_52] : memref<2x8x32xf32, #tpu.memory_space<vmem>>, vector<2x8x32xf32>
      tpu.vector_store %arg8[%c0_50, %c0_51, %c0_52], %79 {strides = array<i32>} : memref<2x8x32xf32, #tpu.memory_space<vmem>>, vector<2x8x32xf32>,
    } else {
    }
    return
  }
  func.func @transform_0(%arg0: i32) -> (i32, i32, i32) {
    %c0_i32 = arith.constant 0 : i32
    %c0_i32_0 = arith.constant 0 : i32
    %c0_i32_1 = arith.constant 0 : i32
    return %arg0, %c0_i32, %c0_i32_0 : i32, i32, i32
  }
  func.func @transform_1(%arg0: i32) -> (i32, i32) {
    %c0_i32 = arith.constant 0 : i32
    %c0_i32_0 = arith.constant 0 : i32
    %c0_i32_1 = arith.constant 0 : i32
    return %c0_i32, %c0_i32_0 : i32, i32
  }
  func.func @transform_2(%arg0: i32) -> (i32, i32) {
    %c0_i32 = arith.constant 0 : i32
    %c0_i32_0 = arith.constant 0 : i32
    %c0_i32_1 = arith.constant 0 : i32
    return %c0_i32, %c0_i32_0 : i32, i32
  }
  func.func @transform_3(%arg0: i32) -> (i32, i32) {
    %c0_i32 = arith.constant 0 : i32
    %c0_i32_0 = arith.constant 0 : i32
    %c0_i32_1 = arith.constant 0 : i32
    return %c0_i32, %c0_i32_0 : i32, i32
  }
  func.func @transform_4(%arg0: i32) -> (i32, i32) {
    %c0_i32 = arith.constant 0 : i32
    %c0_i32_0 = arith.constant 0 : i32
    %c0_i32_1 = arith.constant 0 : i32
    return %c0_i32, %c0_i32_0 : i32, i32
  }
  func.func @transform_5(%arg0: i32) -> (i32, i32) {
    %c0_i32 = arith.constant 0 : i32
    %c0_i32_0 = arith.constant 0 : i32
    %c0_i32_1 = arith.constant 0 : i32
    return %c0_i32, %c0_i32_0 : i32, i32
  }
  func.func @transform_6(%arg0: i32) -> (i32, i32, i32) {
    %c0_i32 = arith.constant 0 : i32
    %c0_i32_0 = arith.constant 0 : i32
    %c0_i32_1 = arith.constant 0 : i32
    %c0_i32_2 = arith.constant 0 : i32
    return %c0_i32, %c0_i32_0, %c0_i32_1 : i32, i32, i32
  }
  func.func @transform_7(%arg0: i32) -> (i32, i32, i32) {
    %c0_i32 = arith.constant 0 : i32
    %c0_i32_0 = arith.constant 0 : i32
    %c0_i32_1 = arith.constant 0 : i32
    %c0_i32_2 = arith.constant 0 : i32
    return %c0_i32, %c0_i32_0, %c0_i32_1 : i32, i32, i32
  }
}

</mosaic_0001>

<llo_original>
// kernel: seq2seq_forward.3
$region0: #{seq2seq_forward.3}
  #allocation0 [shape = 'u32[]', space=smem, size = 0x4, offset = 0x4, fixed_abs, tag = 'smem constant byte address 0x4 - core index']
  #allocation1 [shape = 'u32[144,128]{1,0:T(1,128)}', space=vmem, size = 0x12000, scoped, tag = 'internal scratch']
  #allocation2 [shape = 'f32[2,8,32]{2,1,0:T(8,128)}', space=vmem, size = 0x2000, scoped, tag = 'scratch operand']
  #allocation3 [shape = 'f32[2,8,32]{2,1,0:T(8,128)}', space=vmem, size = 0x2000, scoped, tag = 'scratch operand']
  #allocation4 [shape = 's32[8,1]{1,0:T(8,128)}', space=vmem, size = 0x1000, scoped, tag = 'scratch operand']
  %s0 = inlined_call_operand.vmem [shape: s32[8,1], index: 0, kind: input, shape index: {}]
  %s1 = inlined_call_operand.vmem [shape: f32[2,8,32], index: 1, kind: input, shape index: {}]
  %s2 = inlined_call_operand.vmem [shape: f32[2,8,32], index: 2, kind: input, shape index: {}]
  %s3 = inlined_call_operand.vmem [shape: f32[24,16], index: 3, kind: input, shape index: {}]
  %s4 = inlined_call_operand.vmem [shape: f32[48,128], index: 4, kind: input, shape index: {}]
  %s5 = inlined_call_operand.vmem [shape: f32[1,128], index: 5, kind: input, shape index: {}]
  %s6 = inlined_call_operand.vmem [shape: f32[64,128], index: 6, kind: input, shape index: {}]
  %s7 = inlined_call_operand.vmem [shape: f32[1,128], index: 7, kind: input, shape index: {}]
  %s8 = inlined_call_operand.vmem [shape: f32[32,128], index: 8, kind: input, shape index: {}]
  %s9 = inlined_call_operand.vmem [shape: f32[1,128], index: 9, kind: input, shape index: {}]
  %s10 = inlined_call_operand.vmem [shape: f32[7,8,128], index: 10, kind: output, shape index: {0}]
  %s11 = inlined_call_operand.vmem [shape: s32[7,8,1], index: 11, kind: output, shape index: {1}]
  %12 = xla_tuple %s10, %s11
  %s13 = sld [smem:[#allocation0]]
  $region85: #{seq2seq_forward.3} parent=0
    _
  %s15 = ssub.s32 1, %s13
  %s16 = scalar_select 0, %s15, %s13
  loop: start=0, step=1, limit=9
  $region2: #{seq2seq_forward.3} parent=0 // loop_pre_header
    _
  $region3: #{seq2seq_forward.3} parent=0 // loop_header
    %s18 = sphi 0, %s22
    %p19 = scmp.ge.s32.totalorder %s18, 9
    %s26 = sphi 0, %s26
    %s28 = sphi 0, %s26
    %s29 = sphi 0, %s28
    %s43 = sphi 0, %s29
    %s47 = sphi 0, %s47
    %s49 = sphi 0, %s47
    %s50 = sphi 0, %s49
    %s64 = sphi 0, %s50
    %s68 = sphi 0, %s68
    %s70 = sphi 0, %s68
    %s71 = sphi 0, %s70
    %s85 = sphi 0, %s71
    %s89 = sphi 0, %s89
    %s91 = sphi 0, %s89
    %s92 = sphi 0, %s91
    %s106 = sphi 0, %s92
    %s110 = sphi 0, %s110
    %s112 = sphi 0, %s110
    %s113 = sphi 0, %s112
    %s127 = sphi 0, %s113
    %s131 = sphi 0, %s131
    %s133 = sphi 0, %s131
    %s134 = sphi 0, %s133
    %s148 = sphi 0, %s134
    %s152 = sphi 0, %s152
    %s154 = sphi 0, %s152
    %s155 = sphi 0, %s154
    %s169 = sphi 0, %s155
    %s173 = sphi 0, %s173
    %s175 = sphi 0, %s173
    %s176 = sphi 0, %s175
    %s190 = sphi 0, %s176
    %s194 = sphi 0, %s194
    %s196 = sphi 0, %s194
    %s197 = sphi 0, %s196
    %s211 = sphi 0, %s197
    %s215 = sphi 0, %s215
    %s217 = sphi 0, %s215
    %s218 = sphi 0, %s217
    %s232 = sphi 0, %s218
    %s236 = sphi 0, %s236
    %s238 = sphi 0, %s236
    %s239 = sphi 0, %s238
    %s253 = sphi 0, %s239
    %s257 = sphi 0, %s257
    %s259 = sphi 0, %s257
    %s260 = sphi 0, %s259
    %s274 = sphi 0, %s260
  $region4: #{seq2seq_forward.3} parent=0 // loop_header_branch
    %21 = sbr.rel (%p19) target = $region8
  $region5: #{seq2seq_forward.3} parent=0 // loop_body
    %s23 = ssub.s32 %s18, 1
    %s24 = ssub.s32 %s18, 2
    %s25 = sadd.s32 %s18, 1
    %s27 = sadd.s32 %s26, 1
    %p30 = scmp.eq.s32.totalorder %s18, 6
    %p31 = scmp.ne.s32.totalorder %s26, %s28
    %p32 = scmp.eq.s32.totalorder %s18, 0
    %p33 = por %p31, %p32
    %p34 = scmp.ne.s32.totalorder %s26, %s28
    %p35 = scmp.eq.s32.totalorder %s23, 6
    %p36 = por %p34, %p35
    %p37 = scmp.ne.s32.totalorder %s28, %s29
    %p38 = scmp.eq.s32.totalorder %s23, 0
    %p39 = por %p37, %p38
    %p40 = scmp.ne.s32.totalorder %s28, %s29
    %p41 = scmp.eq.s32.totalorder %s24, 6
    %p42 = por %p40, %p41
    %p44 = scmp.ne.s32.totalorder %s29, %s43
    %p45 = scmp.eq.s32.totalorder %s24, 0
    %p46 = por %p44, %p45
    %s48 = sadd.s32 %s47, 1
    %p51 = scmp.eq.s32.totalorder %s18, 6
    %p52 = scmp.ne.s32.totalorder %s47, %s49
    %p53 = scmp.eq.s32.totalorder %s18, 0
    %p54 = por %p52, %p53
    %p55 = scmp.ne.s32.totalorder %s47, %s49
    %p56 = scmp.eq.s32.totalorder %s23, 6
    %p57 = por %p55, %p56
    %p58 = scmp.ne.s32.totalorder %s49, %s50
    %p59 = scmp.eq.s32.totalorder %s23, 0
    %p60 = por %p58, %p59
    %p61 = scmp.ne.s32.totalorder %s49, %s50
    %p62 = scmp.eq.s32.totalorder %s24, 6
    %p63 = por %p61, %p62
    %p65 = scmp.ne.s32.totalorder %s50, %s64
    %p66 = scmp.eq.s32.totalorder %s24, 0
    %p67 = por %p65, %p66
    %s69 = sadd.s32 %s68, 1
    %p72 = scmp.eq.s32.totalorder %s18, 6
    %p73 = scmp.ne.s32.totalorder %s68, %s70
    %p74 = scmp.eq.s32.totalorder %s18, 0
    %p75 = por %p73, %p74
    %p76 = scmp.ne.s32.totalorder %s68, %s70
    %p77 = scmp.eq.s32.totalorder %s23, 6
    %p78 = por %p76, %p77
    %p79 = scmp.ne.s32.totalorder %s70, %s71
    %p80 = scmp.eq.s32.totalorder %s23, 0
    %p81 = por %p79, %p80
    %p82 = scmp.ne.s32.totalorder %s70, %s71
    %p83 = scmp.eq.s32.totalorder %s24, 6
    %p84 = por %p82, %p83
    %p86 = scmp.ne.s32.totalorder %s71, %s85
    %p87 = scmp.eq.s32.totalorder %s24, 0
    %p88 = por %p86, %p87
    %s90 = sadd.s32 %s89, 1
    %p93 = scmp.eq.s32.totalorder %s18, 6
    %p94 = scmp.ne.s32.totalorder %s89, %s91
    %p95 = scmp.eq.s32.totalorder %s18, 0
    %p96 = por %p94, %p95
    %p97 = scmp.ne.s32.totalorder %s89, %s91
    %p98 = scmp.eq.s32.totalorder %s23, 6
    %p99 = por %p97, %p98
    %p100 = scmp.ne.s32.totalorder %s91, %s92
    %p101 = scmp.eq.s32.totalorder %s23, 0
    %p102 = por %p100, %p101
    %p103 = scmp.ne.s32.totalorder %s91, %s92
    %p104 = scmp.eq.s32.totalorder %s24, 6
    %p105 = por %p103, %p104
    %p107 = scmp.ne.s32.totalorder %s92, %s106
    %p108 = scmp.eq.s32.totalorder %s24, 0
    %p109 = por %p107, %p108
    %s111 = sadd.s32 %s110, 1
    %p114 = scmp.eq.s32.totalorder %s18, 6
    %p115 = scmp.ne.s32.totalorder %s110, %s112
    %p116 = scmp.eq.s32.totalorder %s18, 0
    %p117 = por %p115, %p116
    %p118 = scmp.ne.s32.totalorder %s110, %s112
    %p119 = scmp.eq.s32.totalorder %s23, 6
    %p120 = por %p118, %p119
    %p121 = scmp.ne.s32.totalorder %s112, %s113
    %p122 = scmp.eq.s32.totalorder %s23, 0
    %p123 = por %p121, %p122
    %p124 = scmp.ne.s32.totalorder %s112, %s113
    %p125 = scmp.eq.s32.totalorder %s24, 6
    %p126 = por %p124, %p125
    %p128 = scmp.ne.s32.totalorder %s113, %s127
    %p129 = scmp.eq.s32.totalorder %s24, 0
    %p130 = por %p128, %p129
    %s132 = sadd.s32 %s131, 1
    %p135 = scmp.eq.s32.totalorder %s18, 6
    %p136 = scmp.ne.s32.totalorder %s131, %s133
    %p137 = scmp.eq.s32.totalorder %s18, 0
    %p138 = por %p136, %p137
    %p139 = scmp.ne.s32.totalorder %s131, %s133
    %p140 = scmp.eq.s32.totalorder %s23, 6
    %p141 = por %p139, %p140
    %p142 = scmp.ne.s32.totalorder %s133, %s134
    %p143 = scmp.eq.s32.totalorder %s23, 0
    %p144 = por %p142, %p143
    %p145 = scmp.ne.s32.totalorder %s133, %s134
    %p146 = scmp.eq.s32.totalorder %s24, 6
    %p147 = por %p145, %p146
    %p149 = scmp.ne.s32.totalorder %s134, %s148
    %p150 = scmp.eq.s32.totalorder %s24, 0
    %p151 = por %p149, %p150
    %s153 = sadd.s32 %s152, 1
    %p156 = scmp.eq.s32.totalorder %s18, 6
    %p157 = scmp.ne.s32.totalorder %s152, %s154
    %p158 = scmp.eq.s32.totalorder %s18, 0
    %p159 = por %p157, %p158
    %p160 = scmp.ne.s32.totalorder %s152, %s154
    %p161 = scmp.eq.s32.totalorder %s23, 6
    %p162 = por %p160, %p161
    %p163 = scmp.ne.s32.totalorder %s154, %s155
    %p164 = scmp.eq.s32.totalorder %s23, 0
    %p165 = por %p163, %p164
    %p166 = scmp.ne.s32.totalorder %s154, %s155
    %p167 = scmp.eq.s32.totalorder %s24, 6
    %p168 = por %p166, %p167
    %p170 = scmp.ne.s32.totalorder %s155, %s169
    %p171 = scmp.eq.s32.totalorder %s24, 0
    %p172 = por %p170, %p171
    %s174 = sadd.s32 %s173, 1
    %p177 = scmp.eq.s32.totalorder %s18, 6
    %p178 = scmp.ne.s32.totalorder %s173, %s175
    %p179 = scmp.eq.s32.totalorder %s18, 0
    %p180 = por %p178, %p179
    %p181 = scmp.ne.s32.totalorder %s173, %s175
    %p182 = scmp.eq.s32.totalorder %s23, 6
    %p183 = por %p181, %p182
    %p184 = scmp.ne.s32.totalorder %s175, %s176
    %p185 = scmp.eq.s32.totalorder %s23, 0
    %p186 = por %p184, %p185
    %p187 = scmp.ne.s32.totalorder %s175, %s176
    %p188 = scmp.eq.s32.totalorder %s24, 6
    %p189 = por %p187, %p188
    %p191 = scmp.ne.s32.totalorder %s176, %s190
    %p192 = scmp.eq.s32.totalorder %s24, 0
    %p193 = por %p191, %p192
    %s195 = sadd.s32 %s194, 1
    %p198 = scmp.eq.s32.totalorder %s18, 6
    %p199 = scmp.ne.s32.totalorder %s194, %s196
    %p200 = scmp.eq.s32.totalorder %s18, 0
    %p201 = por %p199, %p200
    %p202 = scmp.ne.s32.totalorder %s194, %s196
    %p203 = scmp.eq.s32.totalorder %s23, 6
    %p204 = por %p202, %p203
    %p205 = scmp.ne.s32.totalorder %s196, %s197
    %p206 = scmp.eq.s32.totalorder %s23, 0
    %p207 = por %p205, %p206
    %p208 = scmp.ne.s32.totalorder %s196, %s197
    %p209 = scmp.eq.s32.totalorder %s24, 6
    %p210 = por %p208, %p209
    %p212 = scmp.ne.s32.totalorder %s197, %s211
    %p213 = scmp.eq.s32.totalorder %s24, 0
    %p214 = por %p212, %p213
    %s216 = sadd.s32 %s215, 1
    %p219 = scmp.eq.s32.totalorder %s18, 6
    %p220 = scmp.ne.s32.totalorder %s215, %s217
    %p221 = scmp.eq.s32.totalorder %s18, 0
    %p222 = por %p220, %p221
    %p223 = scmp.ne.s32.totalorder %s215, %s217
    %p224 = scmp.eq.s32.totalorder %s23, 6
    %p225 = por %p223, %p224
    %p226 = scmp.ne.s32.totalorder %s217, %s218
    %p227 = scmp.eq.s32.totalorder %s23, 0
    %p228 = por %p226, %p227
    %p229 = scmp.ne.s32.totalorder %s217, %s218
    %p230 = scmp.eq.s32.totalorder %s24, 6
    %p231 = por %p229, %p230
    %p233 = scmp.ne.s32.totalorder %s218, %s232
    %p234 = scmp.eq.s32.totalorder %s24, 0
    %p235 = por %p233, %p234
    %s237 = sadd.s32 %s236, 1
    %p240 = scmp.eq.s32.totalorder %s18, 6
    %p241 = scmp.ne.s32.totalorder %s236, %s238
    %p242 = scmp.eq.s32.totalorder %s18, 0
    %p243 = por %p241, %p242
    %p244 = scmp.ne.s32.totalorder %s236, %s238
    %p245 = scmp.eq.s32.totalorder %s23, 6
    %p246 = por %p244, %p245
    %p247 = scmp.ne.s32.totalorder %s238, %s239
    %p248 = scmp.eq.s32.totalorder %s23, 0
    %p249 = por %p247, %p248
    %p250 = scmp.ne.s32.totalorder %s238, %s239
    %p251 = scmp.eq.s32.totalorder %s24, 6
    %p252 = por %p250, %p251
    %p254 = scmp.ne.s32.totalorder %s239, %s253
    %p255 = scmp.eq.s32.totalorder %s24, 0
    %p256 = por %p254, %p255
    %s258 = sadd.s32 %s257, 1
    %p261 = scmp.eq.s32.totalorder %s18, 6
    %p262 = scmp.ne.s32.totalorder %s257, %s259
    %p263 = scmp.eq.s32.totalorder %s18, 0
    %p264 = por %p262, %p263
    %p265 = scmp.ne.s32.totalorder %s257, %s259
    %p266 = scmp.eq.s32.totalorder %s23, 6
    %p267 = por %p265, %p266
    %p268 = scmp.ne.s32.totalorder %s259, %s260
    %p269 = scmp.eq.s32.totalorder %s23, 0
    %p270 = por %p268, %p269
    %p271 = scmp.ne.s32.totalorder %s259, %s260
    %p272 = scmp.eq.s32.totalorder %s24, 6
    %p273 = por %p271, %p272
    %p275 = scmp.ne.s32.totalorder %s260, %s274
    %p276 = scmp.eq.s32.totalorder %s24, 0
    %p277 = por %p275, %p276
    %p278 = scmp.le.s32.totalorder 1, %s18
    %p279 = scmp.lt.s32.totalorder %s18, 8
    %p280 = pnand %p278, %p279
    %p281 = pneg %p280
    // Predicated region
    $region9: #{seq2seq_forward.3} parent=5 // pred_check
      _
    $region10: #{seq2seq_forward.3} parent=5 // pred_check_branch
      %283 = sbr.rel (%p280) target = $region12
    $region11: #{seq2seq_forward.3} parent=5 // pred_region
      %s284 = ssub.s32 %s18, 1
      // Predicated region
      $region13: #{seq2seq_forward.3} parent=11 // pred_check
        %p285 = pneg %p39
      $region14: #{seq2seq_forward.3} parent=11 // pred_check_branch
        %287 = sbr.rel (%p285) target = $region16
      $region15: #{seq2seq_forward.3} parent=11 // pred_region
        _
      $region16: #{seq2seq_forward.3} parent=11 // pred_fallthru
        _
      // Predicated region
      $region17: #{seq2seq_forward.3} parent=11 // pred_check
        %p288 = pneg %p60
      $region18: #{seq2seq_forward.3} parent=11 // pred_check_branch
        %290 = sbr.rel (%p288) target = $region20
      $region19: #{seq2seq_forward.3} parent=11 // pred_region
        _
      $region20: #{seq2seq_forward.3} parent=11 // pred_fallthru
        _
      // Predicated region
      $region21: #{seq2seq_forward.3} parent=11 // pred_check
        %p291 = pneg %p81
      $region22: #{seq2seq_forward.3} parent=11 // pred_check_branch
        %293 = sbr.rel (%p291) target = $region24
      $region23: #{seq2seq_forward.3} parent=11 // pred_region
        _
      $region24: #{seq2seq_forward.3} parent=11 // pred_fallthru
        _
      // Predicated region
      $region25: #{seq2seq_forward.3} parent=11 // pred_check
        %p294 = pneg %p102
      $region26: #{seq2seq_forward.3} parent=11 // pred_check_branch
        %296 = sbr.rel (%p294) target = $region28
      $region27: #{seq2seq_forward.3} parent=11 // pred_region
        _
      $region28: #{seq2seq_forward.3} parent=11 // pred_fallthru
        _
      // Predicated region
      $region29: #{seq2seq_forward.3} parent=11 // pred_check
        %p297 = pneg %p123
      $region30: #{seq2seq_forward.3} parent=11 // pred_check_branch
        %299 = sbr.rel (%p297) target = $region32
      $region31: #{seq2seq_forward.3} parent=11 // pred_region
        _
      $region32: #{seq2seq_forward.3} parent=11 // pred_fallthru
        _
      // Predicated region
      $region33: #{seq2seq_forward.3} parent=11 // pred_check
        %p300 = pneg %p144
      $region34: #{seq2seq_forward.3} parent=11 // pred_check_branch
        %302 = sbr.rel (%p300) target = $region36
      $region35: #{seq2seq_forward.3} parent=11 // pred_region
        _
      $region36: #{seq2seq_forward.3} parent=11 // pred_fallthru
        _
      // Predicated region
      $region37: #{seq2seq_forward.3} parent=11 // pred_check
        %p303 = pneg %p165
      $region38: #{seq2seq_forward.3} parent=11 // pred_check_branch
        %305 = sbr.rel (%p303) target = $region40
      $region39: #{seq2seq_forward.3} parent=11 // pred_region
        _
      $region40: #{seq2seq_forward.3} parent=11 // pred_fallthru
        _
      // Predicated region
      $region41: #{seq2seq_forward.3} parent=11 // pred_check
        %p306 = pneg %p186
      $region42: #{seq2seq_forward.3} parent=11 // pred_check_branch
        %308 = sbr.rel (%p306) target = $region44
      $region43: #{seq2seq_forward.3} parent=11 // pred_region
        _
      $region44: #{seq2seq_forward.3} parent=11 // pred_fallthru
        _
      // Predicated region
      $region45: #{seq2seq_forward.3} parent=11 // pred_check
        %p309 = pneg %p207
      $region46: #{seq2seq_forward.3} parent=11 // pred_check_branch
        %311 = sbr.rel (%p309) target = $region48
      $region47: #{seq2seq_forward.3} parent=11 // pred_region
        _
      $region48: #{seq2seq_forward.3} parent=11 // pred_fallthru
        _
      // Predicated region
      $region49: #{seq2seq_forward.3} parent=11 // pred_check
        %p312 = pneg %p228
      $region50: #{seq2seq_forward.3} parent=11 // pred_check_branch
        %314 = sbr.rel (%p312) target = $region52
      $region51: #{seq2seq_forward.3} parent=11 // pred_region
        _
      $region52: #{seq2seq_forward.3} parent=11 // pred_fallthru
        _
    $region12: #{seq2seq_forward.3} parent=5 // pred_fallthru
      _
    %p315 = scmp.lt.s32.totalorder %s18, 7
    // Predicated region
    $region53: #{seq2seq_forward.3} parent=5 // pred_check
      %p316 = pneg %p315
    $region54: #{seq2seq_forward.3} parent=5 // pred_check_branch
      %318 = sbr.rel (%p316) target = $region56
    $region55: #{seq2seq_forward.3} parent=5 // pred_region
      _
    $region56: #{seq2seq_forward.3} parent=5 // pred_fallthru
      _
    %p319 = scmp.le.s32.totalorder 1, %s18
    %p320 = scmp.lt.s32.totalorder %s18, 8
    %p321 = pnand %p319, %p320
    %p322 = pneg %p321
    // Predicated region
    $region57: #{seq2seq_forward.3} parent=5 // pred_check
      _
    $region58: #{seq2seq_forward.3} parent=5 // pred_check_branch
      %324 = sbr.rel (%p321) target = $region60
    $region59: #{seq2seq_forward.3} parent=5 // pred_region
      %s325 = ssub.s32 %s18, 1
      %p326 = pneg %p39
      %p327 = pneg %p36
      %p328 = pneg %p60
      %p329 = pneg %p57
      %p330 = pneg %p81
      %p331 = pneg %p78
      %p332 = pneg %p102
      %p333 = pneg %p99
      %p334 = pneg %p123
      %p335 = pneg %p120
      %p336 = pneg %p144
      %p337 = pneg %p141
      %p338 = pneg %p165
      %p339 = pneg %p162
      %p340 = pneg %p186
      %p341 = pneg %p183
      %p342 = pneg %p207
      %p343 = pneg %p204
      %p344 = pneg %p228
      %p345 = pneg %p225
      %p346 = pneg %p249
      %p347 = pneg %p246
      %p348 = pneg %p270
      %p349 = pneg %p267
      %p350 = scmp.eq.s32.totalorder %s23, 0
      // Predicated region
      $region61: #{seq2seq_forward.3} parent=59 // pred_check
        %p351 = pneg %p350
      $region62: #{seq2seq_forward.3} parent=59 // pred_check_branch
        %353 = sbr.rel (%p351) target = $region64
      $region63: #{seq2seq_forward.3} parent=59 // pred_region
        %v354 = vld [vmem:[%s1] sm:$0xff]
        %v355 = vld [vmem:[%s1 + $0x8] sm:$0xff]
        %vm356 = vcmask 261120
        %357 = vst.msk [vmem:[#allocation2] sm:$0xff] %vm356, %v354
        %358 = vst.msk [vmem:[#allocation2 + $0x8] sm:$0xff] %vm356, %v355
        %v359 = vld [vmem:[%s2] sm:$0xff]
        %v360 = vld [vmem:[%s2 + $0x8] sm:$0xff]
        %361 = vst.msk [vmem:[#allocation3] sm:$0xff] %vm356, %v359
        %362 = vst.msk [vmem:[#allocation3 + $0x8] sm:$0xff] %vm356, %v360
        %v363 = vld [vmem:[%s0] sm:$0xff]
        %vm364 = vcmask 7168
        %365 = vst.msk [vmem:[#allocation4] sm:$0xff] %vm364, %v363
      $region64: #{seq2seq_forward.3} parent=59 // pred_fallthru
        _
      %v366 = vld [vmem:[#allocation4] sm:$0xff]
      %v367 = vlaneseq
      %v368 = vand.u32 %v367, 127
      %369 = vset.pattern.permute.xlu0 0
      %370 = vperm.xlu0 %369, %v366
      %v371 = vpop.permute.xlu0 %370
      %vm372 = vcmp.eq.s32.totalorder %v368, %v371
      %v373 = vsel %vm372, 1, 0
      %v374 = vcvt.s32.f32 %v373
      %v375 = vld [vmem:[%s3] sm:$0xff]
      %v376 = vld [vmem:[%s3 + $0x8] sm:$0xff]
      %v377 = vld [vmem:[%s3 + $0x10] sm:$0xff]
      %vm378 = vcmask 195584
      %v380 = vsel %vm378, %v374, 0
      %382 = vmatprep.subr.mxu0 0.0
      %383 = vmatpush1.msra.mxu0 0.0
      %384 = vmatprep.subr.mxu0 0.0
      %385 = vmatpush1.msra.mxu0 0.0
      %386 = vmatprep.subr.mxu0 0.0
      %387 = vmatpush1.msra.mxu0 0.0
      %388 = vmatprep.subr.mxu0 0.0
      %389 = vmatpush1.msra.mxu0 0.0
      %390 = vmatprep.subr.mxu0 0.0
      %391 = vmatpush1.msra.mxu0 0.0
      %392 = vmatprep.subr.mxu0 0.0
      %393 = vmatpush1.msra.mxu0 0.0
      %394 = vmatprep.subr.mxu0 0.0
      %395 = vmatpush1.msra.mxu0 0.0
      %396 = vmatprep.subr.mxu0 0.0
      %397 = vmatpush1.msra.mxu0 0.0
      %398 = vmatprep.subr.mxu0 0.0
      %399 = vmatpush1.msra.mxu0 0.0
      %400 = vmatprep.subr.mxu0 0.0
      %401 = vmatpush1.msra.mxu0 0.0
      %402 = vmatprep.subr.mxu0 0.0
      %403 = vmatpush1.msra.mxu0 0.0
      %404 = vmatprep.subr.mxu0 0.0
      %405 = vmatpush1.msra.mxu0 0.0
      %406 = vmatprep.subr.mxu0 0.0
      %407 = vmatpush1.msra.mxu0 0.0
      %408 = vmatprep.subr.mxu0 0.0
      %409 = vmatpush1.msra.mxu0 %v377
      %410 = vmatprep.subr.mxu0 0.0
      %411 = vmatpush1.msra.mxu0 %v376
      %412 = vmatprep.subr.mxu0 0.0
      %413 = vmatpush1.msra.mxu0 %v375
      %414 = vmatprep.subr.mxu0 0.0
      %415 = vmatpush2.msra.mxu0 0.0
      %416 = vmatprep.subr.mxu0 0.0
      %417 = vmatpush2.msra.mxu0 0.0
      %418 = vmatprep.subr.mxu0 0.0
      %419 = vmatpush2.msra.mxu0 0.0
      %420 = vmatprep.subr.mxu0 0.0
      %421 = vmatpush2.msra.mxu0 0.0
      %422 = vmatprep.subr.mxu0 0.0
      %423 = vmatpush2.msra.mxu0 0.0
      %424 = vmatprep.subr.mxu0 0.0
      %425 = vmatpush2.msra.mxu0 0.0
      %426 = vmatprep.subr.mxu0 0.0
      %427 = vmatpush2.msra.mxu0 0.0
      %428 = vmatprep.subr.mxu0 0.0
      %429 = vmatpush2.msra.mxu0 0.0
      %430 = vmatprep.subr.mxu0 0.0
      %431 = vmatpush2.msra.mxu0 0.0
      %432 = vmatprep.subr.mxu0 0.0
      %433 = vmatpush2.msra.mxu0 0.0
      %434 = vmatprep.subr.mxu0 0.0
      %435 = vmatpush2.msra.mxu0 0.0
      %436 = vmatprep.subr.mxu0 0.0
      %437 = vmatpush2.msra.mxu0 0.0
      %438 = vmatprep.subr.mxu0 0.0
      %439 = vmatpush2.msra.mxu0 0.0
      %440 = vmatprep.subr.mxu0 0.0
      %441 = vmatpush2.msra.mxu0 0.0
      %442 = vmatprep.subr.mxu0 0.0
      %443 = vmatpush2.msra.mxu0 0.0
      %444 = vmatprep.subr.mxu0 0.0
      %445 = vmatpush2.msra.mxu0 0.0
      %446 = vmatprep.mubr.f32.mxu0 0.0
      %447 = vmatmul.mubr.f32.gmra.mxu0 %v380
      %v448 = vpop.f32.mrf.mxu0
      %v449 = vadd.f32 0.0, %v448
      %v450 = vpop.f32.mrf.mxu0
      %451 = vdwg.mxu0
      %v452 = vld [vmem:[#allocation2] sm:$0xff]
      %v453 = vld [vmem:[#allocation3] sm:$0xff]
      %v454 = vld [vmem:[%s4] sm:$0xff]
      %v455 = vld [vmem:[%s4 + $0x8] sm:$0xff]
      %v456 = vld [vmem:[%s4 + $0x10] sm:$0xff]
      %v457 = vld [vmem:[%s4 + $0x18] sm:$0xff]
      %v458 = vld [vmem:[%s4 + $0x20] sm:$0xff]
      %v459 = vld [vmem:[%s4 + $0x28] sm:$0xff]
      %v460 = vld [vmem:[%s5] sm:$0x1]
      %462 = vrot.lane.b32.xlu0 %v452, 16
      %v463 = vpop.permute.xlu0 %462
      %vm465 = vcmask 130048
      %v466 = vsel %vm465, %v449, %v463
      %v468 = vlaneseq
      %v469 = vshrl.u32 %v468, 7
      %v470 = vsub.s32 0, %v469
      %v471 = vrot.slane %v460, %v470
      %vm473 = vcmask 392192
      %v475 = vsel %vm473, %v466, 0
      %477 = vmatprep.subr.mxu0 0.0
      %478 = vmatpush1.msra.mxu0 0.0
      %479 = vmatprep.subr.mxu0 0.0
      %480 = vmatpush1.msra.mxu0 0.0
      %481 = vmatprep.subr.mxu0 0.0
      %482 = vmatpush1.msra.mxu0 0.0
      %483 = vmatprep.subr.mxu0 0.0
      %484 = vmatpush1.msra.mxu0 0.0
      %485 = vmatprep.subr.mxu0 0.0
      %486 = vmatpush1.msra.mxu0 0.0
      %487 = vmatprep.subr.mxu0 0.0
      %488 = vmatpush1.msra.mxu0 0.0
      %489 = vmatprep.subr.mxu0 0.0
      %490 = vmatpush1.msra.mxu0 0.0
      %491 = vmatprep.subr.mxu0 0.0
      %492 = vmatpush1.msra.mxu0 0.0
      %493 = vmatprep.subr.mxu0 0.0
      %494 = vmatpush1.msra.mxu0 0.0
      %495 = vmatprep.subr.mxu0 0.0
      %496 = vmatpush1.msra.mxu0 0.0
      %497 = vmatprep.subr.mxu0 0.0
      %498 = vmatpush1.msra.mxu0 %v459
      %499 = vmatprep.subr.mxu0 0.0
      %500 = vmatpush1.msra.mxu0 %v458
      %501 = vmatprep.subr.mxu0 0.0
      %502 = vmatpush1.msra.mxu0 %v457
      %503 = vmatprep.subr.mxu0 0.0
      %504 = vmatpush1.msra.mxu0 %v456
      %505 = vmatprep.subr.mxu0 0.0
      %506 = vmatpush1.msra.mxu0 %v455
      %507 = vmatprep.subr.mxu0 0.0
      %508 = vmatpush1.msra.mxu0 %v454
      %509 = vmatprep.subr.mxu0 0.0
      %510 = vmatpush2.msra.mxu0 0.0
      %511 = vmatprep.subr.mxu0 0.0
      %512 = vmatpush2.msra.mxu0 0.0
      %513 = vmatprep.subr.mxu0 0.0
      %514 = vmatpush2.msra.mxu0 0.0
      %515 = vmatprep.subr.mxu0 0.0
      %516 = vmatpush2.msra.mxu0 0.0
      %517 = vmatprep.subr.mxu0 0.0
      %518 = vmatpush2.msra.mxu0 0.0
      %519 = vmatprep.subr.mxu0 0.0
      %520 = vmatpush2.msra.mxu0 0.0
      %521 = vmatprep.subr.mxu0 0.0
      %522 = vmatpush2.msra.mxu0 0.0
      %523 = vmatprep.subr.mxu0 0.0
      %524 = vmatpush2.msra.mxu0 0.0
      %525 = vmatprep.subr.mxu0 0.0
      %526 = vmatpush2.msra.mxu0 0.0
      %527 = vmatprep.subr.mxu0 0.0
      %528 = vmatpush2.msra.mxu0 0.0
      %529 = vmatprep.subr.mxu0 0.0
      %530 = vmatpush2.msra.mxu0 0.0
      %531 = vmatprep.subr.mxu0 0.0
      %532 = vmatpush2.msra.mxu0 0.0
      %533 = vmatprep.subr.mxu0 0.0
      %534 = vmatpush2.msra.mxu0 0.0
      %535 = vmatprep.subr.mxu0 0.0
      %536 = vmatpush2.msra.mxu0 0.0
      %537 = vmatprep.subr.mxu0 0.0
      %538 = vmatpush2.msra.mxu0 0.0
      %539 = vmatprep.subr.mxu0 0.0
      %540 = vmatpush2.msra.mxu0 0.0
      %541 = vmatprep.mubr.f32.mxu0 0.0
      %542 = vmatmul.mubr.f32.gmra.mxu0 %v475
      %v543 = vpop.f32.mrf.mxu0
      %v544 = vadd.f32 %v471, %v543
      %v545 = vpop.f32.mrf.mxu0
      %546 = vdwg.mxu0
      %v547 = vxor.u32 %v544, 2147483648
      %v548 = vmul.f32 %v547, 1.442695
      %v549 = vpow.pop %v548
      %v550 = vadd.f32 %v549, 1.0
      %v551 = vrcp.pop %v550
      %v552 = vmul.f32 1.0, %v551
      %v553 = vtanh.pop %v544
      %555 = vrot.lane.b32.xlu0 %v453, 32
      %v556 = vpop.permute.xlu0 %555
      %v558 = vmul.f32 %v552, %v556
      %560 = vrot.lane.b32.xlu0 %v553, 64
      %v561 = vpop.permute.xlu0 %560
      %v563 = vmul.f32 %v552, %v561
      %565 = vrot.lane.b32.xlu0 %v563, 32
      %v566 = vpop.permute.xlu0 %565
      %v568 = vadd.f32 %v558, %v566
      %v569 = vtanh.pop %v568
      %571 = vrot.lane.b32.xlu0 %v569, 64
      %v572 = vpop.permute.xlu0 %571
      %v574 = vmul.f32 %v552, %v572
      %576 = vrot.lane.b32.xlu0 %v574, 32
      %v577 = vpop.permute.xlu0 %576
      %vm579 = vcmask 261120
      %580 = vst.msk [vmem:[#allocation2] sm:$0xff] %vm579, %v577
      %582 = vrot.lane.b32.xlu0 %v568, 96
      %v583 = vpop.permute.xlu0 %582
      %585 = vst.msk [vmem:[#allocation3] sm:$0xff] %vm579, %v583
      %s586 = scalar_lea.vmem [#allocation2], 8
      %v587 = vld [vmem:[%s586] sm:$0xff]
      %s588 = scalar_lea.vmem [#allocation3], 8
      %v589 = vld [vmem:[%s588] sm:$0xff]
      %v590 = vld [vmem:[%s6] sm:$0xff]
      %v591 = vld [vmem:[%s6 + $0x8] sm:$0xff]
      %v592 = vld [vmem:[%s6 + $0x10] sm:$0xff]
      %v593 = vld [vmem:[%s6 + $0x18] sm:$0xff]
      %v594 = vld [vmem:[%s6 + $0x20] sm:$0xff]
      %v595 = vld [vmem:[%s6 + $0x28] sm:$0xff]
      %v596 = vld [vmem:[%s6 + $0x30] sm:$0xff]
      %v597 = vld [vmem:[%s6 + $0x38] sm:$0xff]
      %v598 = vld [vmem:[%s7] sm:$0x1]
      %600 = vrot.lane.b32.xlu0 %v587, 32
      %v601 = vpop.permute.xlu0 %600
      %v603 = vsel %vm579, %v577, %v601
      %v605 = vlaneseq
      %v606 = vshrl.u32 %v605, 7
      %v607 = vsub.s32 0, %v606
      %v608 = vrot.slane %v598, %v607
      %vm610 = vcmask 523264
      %v612 = vsel %vm610, %v603, 0
      %614 = vmatprep.subr.mxu0 0.0
      %615 = vmatpush1.msra.mxu0 0.0
      %616 = vmatprep.subr.mxu0 0.0
      %617 = vmatpush1.msra.mxu0 0.0
      %618 = vmatprep.subr.mxu0 0.0
      %619 = vmatpush1.msra.mxu0 0.0
      %620 = vmatprep.subr.mxu0 0.0
      %621 = vmatpush1.msra.mxu0 0.0
      %622 = vmatprep.subr.mxu0 0.0
      %623 = vmatpush1.msra.mxu0 0.0
      %624 = vmatprep.subr.mxu0 0.0
      %625 = vmatpush1.msra.mxu0 0.0
      %626 = vmatprep.subr.mxu0 0.0
      %627 = vmatpush1.msra.mxu0 0.0
      %628 = vmatprep.subr.mxu0 0.0
      %629 = vmatpush1.msra.mxu0 0.0
      %630 = vmatprep.subr.mxu0 0.0
      %631 = vmatpush1.msra.mxu0 %v597
      %632 = vmatprep.subr.mxu0 0.0
      %633 = vmatpush1.msra.mxu0 %v596
      %634 = vmatprep.subr.mxu0 0.0
      %635 = vmatpush1.msra.mxu0 %v595
      %636 = vmatprep.subr.mxu0 0.0
      %637 = vmatpush1.msra.mxu0 %v594
      %638 = vmatprep.subr.mxu0 0.0
      %639 = vmatpush1.msra.mxu0 %v593
      %640 = vmatprep.subr.mxu0 0.0
      %641 = vmatpush1.msra.mxu0 %v592
      %642 = vmatprep.subr.mxu0 0.0
      %643 = vmatpush1.msra.mxu0 %v591
      %644 = vmatprep.subr.mxu0 0.0
      %645 = vmatpush1.msra.mxu0 %v590
      %646 = vmatprep.subr.mxu0 0.0
      %647 = vmatpush2.msra.mxu0 0.0
      %648 = vmatprep.subr.mxu0 0.0
      %649 = vmatpush2.msra.mxu0 0.0
      %650 = vmatprep.subr.mxu0 0.0
      %651 = vmatpush2.msra.mxu0 0.0
      %652 = vmatprep.subr.mxu0 0.0
      %653 = vmatpush2.msra.mxu0 0.0
      %654 = vmatprep.subr.mxu0 0.0
      %655 = vmatpush2.msra.mxu0 0.0
      %656 = vmatprep.subr.mxu0 0.0
      %657 = vmatpush2.msra.mxu0 0.0
      %658 = vmatprep.subr.mxu0 0.0
      %659 = vmatpush2.msra.mxu0 0.0
      %660 = vmatprep.subr.mxu0 0.0
      %661 = vmatpush2.msra.mxu0 0.0
      %662 = vmatprep.subr.mxu0 0.0
      %663 = vmatpush2.msra.mxu0 0.0
      %664 = vmatprep.subr.mxu0 0.0
      %665 = vmatpush2.msra.mxu0 0.0
      %666 = vmatprep.subr.mxu0 0.0
      %667 = vmatpush2.msra.mxu0 0.0
      %668 = vmatprep.subr.mxu0 0.0
      %669 = vmatpush2.msra.mxu0 0.0
      %670 = vmatprep.subr.mxu0 0.0
      %671 = vmatpush2.msra.mxu0 0.0
      %672 = vmatprep.subr.mxu0 0.0
      %673 = vmatpush2.msra.mxu0 0.0
      %674 = vmatprep.subr.mxu0 0.0
      %675 = vmatpush2.msra.mxu0 0.0
      %676 = vmatprep.subr.mxu0 0.0
      %677 = vmatpush2.msra.mxu0 0.0
      %678 = vmatprep.mubr.f32.mxu0 0.0
      %679 = vmatmul.mubr.f32.gmra.mxu0 %v612
      %v680 = vpop.f32.mrf.mxu0
      %v681 = vadd.f32 %v608, %v680
      %v682 = vpop.f32.mrf.mxu0
      %683 = vdwg.mxu0
      %v684 = vxor.u32 %v681, 2147483648
      %v685 = vmul.f32 %v684, 1.442695
      %v686 = vpow.pop %v685
      %v687 = vadd.f32 %v686, 1.0
      %v688 = vrcp.pop %v687
      %v689 = vmul.f32 1.0, %v688
      %v690 = vtanh.pop %v681
      %692 = vrot.lane.b32.xlu0 %v589, 32
      %v693 = vpop.permute.xlu0 %692
      %v695 = vmul.f32 %v689, %v693
      %697 = vrot.lane.b32.xlu0 %v690, 64
      %v698 = vpop.permute.xlu0 %697
      %v700 = vmul.f32 %v689, %v698
      %702 = vrot.lane.b32.xlu0 %v700, 32
      %v703 = vpop.permute.xlu0 %702
      %v705 = vadd.f32 %v695, %v703
      %v706 = vtanh.pop %v705
      %708 = vrot.lane.b32.xlu0 %v706, 64
      %v709 = vpop.permute.xlu0 %708
      %v711 = vmul.f32 %v689, %v709
      %713 = vrot.lane.b32.xlu0 %v711, 32
      %v714 = vpop.permute.xlu0 %713
      %716 = vst.msk [vmem:[%s586] sm:$0xff] %vm579, %v714
      %718 = vrot.lane.b32.xlu0 %v705, 96
      %v719 = vpop.permute.xlu0 %718
      %721 = vst.msk [vmem:[%s588] sm:$0xff] %vm579, %v719
      %v722 = vld [vmem:[%s8] sm:$0xff]
      %v723 = vld [vmem:[%s8 + $0x8] sm:$0xff]
      %v724 = vld [vmem:[%s8 + $0x10] sm:$0xff]
      %v725 = vld [vmem:[%s8 + $0x18] sm:$0xff]
      %v726 = vld [vmem:[%s9] sm:$0x1]
      %v728 = vlaneseq
      %v729 = vshrl.u32 %v728, 7
      %v730 = vsub.s32 0, %v729
      %v731 = vrot.slane %v726, %v730
      %v733 = vsel %vm579, %v714, 0
      %735 = vmatprep.subr.mxu0 0.0
      %736 = vmatpush1.msra.mxu0 0.0
      %737 = vmatprep.subr.mxu0 0.0
      %738 = vmatpush1.msra.mxu0 0.0
      %739 = vmatprep.subr.mxu0 0.0
      %740 = vmatpush1.msra.mxu0 0.0
      %741 = vmatprep.subr.mxu0 0.0
      %742 = vmatpush1.msra.mxu0 0.0
      %743 = vmatprep.subr.mxu0 0.0
      %744 = vmatpush1.msra.mxu0 0.0
      %745 = vmatprep.subr.mxu0 0.0
      %746 = vmatpush1.msra.mxu0 0.0
      %747 = vmatprep.subr.mxu0 0.0
      %748 = vmatpush1.msra.mxu0 0.0
      %749 = vmatprep.subr.mxu0 0.0
      %750 = vmatpush1.msra.mxu0 0.0
      %751 = vmatprep.subr.mxu0 0.0
      %752 = vmatpush1.msra.mxu0 0.0
      %753 = vmatprep.subr.mxu0 0.0
      %754 = vmatpush1.msra.mxu0 0.0
      %755 = vmatprep.subr.mxu0 0.0
      %756 = vmatpush1.msra.mxu0 0.0
      %757 = vmatprep.subr.mxu0 0.0
      %758 = vmatpush1.msra.mxu0 0.0
      %759 = vmatprep.subr.mxu0 0.0
      %760 = vmatpush1.msra.mxu0 %v725
      %761 = vmatprep.subr.mxu0 0.0
      %762 = vmatpush1.msra.mxu0 %v724
      %763 = vmatprep.subr.mxu0 0.0
      %764 = vmatpush1.msra.mxu0 %v723
      %765 = vmatprep.subr.mxu0 0.0
      %766 = vmatpush1.msra.mxu0 %v722
      %767 = vmatprep.subr.mxu0 0.0
      %768 = vmatpush2.msra.mxu0 0.0
      %769 = vmatprep.subr.mxu0 0.0
      %770 = vmatpush2.msra.mxu0 0.0
      %771 = vmatprep.subr.mxu0 0.0
      %772 = vmatpush2.msra.mxu0 0.0
      %773 = vmatprep.subr.mxu0 0.0
      %774 = vmatpush2.msra.mxu0 0.0
      %775 = vmatprep.subr.mxu0 0.0
      %776 = vmatpush2.msra.mxu0 0.0
      %777 = vmatprep.subr.mxu0 0.0
      %778 = vmatpush2.msra.mxu0 0.0
      %779 = vmatprep.subr.mxu0 0.0
      %780 = vmatpush2.msra.mxu0 0.0
      %781 = vmatprep.subr.mxu0 0.0
      %782 = vmatpush2.msra.mxu0 0.0
      %783 = vmatprep.subr.mxu0 0.0
      %784 = vmatpush2.msra.mxu0 0.0
      %785 = vmatprep.subr.mxu0 0.0
      %786 = vmatpush2.msra.mxu0 0.0
      %787 = vmatprep.subr.mxu0 0.0
      %788 = vmatpush2.msra.mxu0 0.0
      %789 = vmatprep.subr.mxu0 0.0
      %790 = vmatpush2.msra.mxu0 0.0
      %791 = vmatprep.subr.mxu0 0.0
      %792 = vmatpush2.msra.mxu0 0.0
      %793 = vmatprep.subr.mxu0 0.0
      %794 = vmatpush2.msra.mxu0 0.0
      %795 = vmatprep.subr.mxu0 0.0
      %796 = vmatpush2.msra.mxu0 0.0
      %797 = vmatprep.subr.mxu0 0.0
      %798 = vmatpush2.msra.mxu0 0.0
      %799 = vmatprep.mubr.f32.mxu0 0.0
      %800 = vmatmul.mubr.f32.gmra.mxu0 %v733
      %v801 = vpop.f32.mrf.mxu0
      %v802 = vadd.f32 %v731, %v801
      %v803 = vpop.f32.mrf.mxu0
      %804 = vdwg.mxu0
      %s805 = smul.u32 %s23, 8
      %s806 = scalar_lea.vmem %s10, %s805
      %807 = vst [vmem:[%s806] sm:$0xff] %v802
      %808 = vmax.xlane.f32.xlu0 %v802
      %v809 = vpop.xlane.xlu0 %808
      %vm810 = vcmp.eq.f32.partialorder %v802, %v809
      %v811 = vsel %vm810, %v368, 128
      %v812 = vand.u32 %v811, 65535
      %v813 = vshra.s32 %v811, 16
      %v814 = vcvt.s32.f32 %v812
      %v815 = vcvt.s32.f32 %v813
      %816 = vmin.xlane.f32.xlu0 %v815
      %v817 = vpop.xlane.xlu0 %816
      %vm818 = vcmp.eq.f32.partialorder %v815, %v817
      %v819 = vsel %vm818, %v814, inf
      %820 = vmin.xlane.f32.xlu0 %v819
      %v821 = vpop.xlane.xlu0 %820
      %v822 = vcvt.f32.s32 %v821
      %v823 = vcvt.f32.s32 %v817
      %v824 = vshll.u32 %v823, 16
      %v825 = vadd.s32 %v824, %v822
      %s826 = scalar_lea.vmem %s11, %s805
      %vm827 = vcmask 7168
      %828 = vst.msk [vmem:[%s826] sm:$0xff] %vm827, %v825
      %829 = vst.msk [vmem:[#allocation4] sm:$0xff] %vm827, %v825
      // Predicated region
      $region65: #{seq2seq_forward.3} parent=59 // pred_check
        %p830 = pneg %p246
      $region66: #{seq2seq_forward.3} parent=59 // pred_check_branch
        %832 = sbr.rel (%p830) target = $region68
      $region67: #{seq2seq_forward.3} parent=59 // pred_region
        _
      $region68: #{seq2seq_forward.3} parent=59 // pred_fallthru
        _
      // Predicated region
      $region69: #{seq2seq_forward.3} parent=59 // pred_check
        %p833 = pneg %p267
      $region70: #{seq2seq_forward.3} parent=59 // pred_check_branch
        %835 = sbr.rel (%p833) target = $region72
      $region71: #{seq2seq_forward.3} parent=59 // pred_region
        _
      $region72: #{seq2seq_forward.3} parent=59 // pred_fallthru
        _
      // Predicated region
      $region73: #{seq2seq_forward.3} parent=59 // pred_check
        %p836 = pneg %p246
      $region74: #{seq2seq_forward.3} parent=59 // pred_check_branch
        %838 = sbr.rel (%p836) target = $region76
      $region75: #{seq2seq_forward.3} parent=59 // pred_region
        _
      $region76: #{seq2seq_forward.3} parent=59 // pred_fallthru
        _
      // Predicated region
      $region77: #{seq2seq_forward.3} parent=59 // pred_check
        %p839 = pneg %p267
      $region78: #{seq2seq_forward.3} parent=59 // pred_check_branch
        %841 = sbr.rel (%p839) target = $region80
      $region79: #{seq2seq_forward.3} parent=59 // pred_region
        _
      $region80: #{seq2seq_forward.3} parent=59 // pred_fallthru
        _
    $region60: #{seq2seq_forward.3} parent=5 // pred_fallthru
      _
    %p842 = scmp.le.s32.totalorder 2, %s18
    // Predicated region
    $region81: #{seq2seq_forward.3} parent=5 // pred_check
      %p843 = pneg %p842
    $region82: #{seq2seq_forward.3} parent=5 // pred_check_branch
      %845 = sbr.rel (%p843) target = $region84
    $region83: #{seq2seq_forward.3} parent=5 // pred_region
      %s846 = ssub.s32 %s18, 2
    $region84: #{seq2seq_forward.3} parent=5 // pred_fallthru
      _
  $region6: #{seq2seq_forward.3} parent=0 // loop_footer
    %s22 = sadd.s32 1, %s18
  $region7: #{seq2seq_forward.3} parent=0 // loop_footer_branch
    %17 = sbr.rel target = $region3
  $region8: #{seq2seq_forward.3} parent=0 // loop_exit
    _

// kernel: seq2seq_forward.2
$region0: #{seq2seq_forward.2}
  #allocation0 [shape = 'u32[]', space=smem, size = 0x4, offset = 0x4, fixed_abs, tag = 'smem constant byte address 0x4 - core index']
  #allocation1 [shape = 'u32[144,128]{1,0:T(1,128)}', space=vmem, size = 0x12000, scoped, tag = 'internal scratch']
  #allocation2 [shape = 'f32[2,8,32]{2,1,0:T(8,128)}', space=vmem, size = 0x2000, scoped, tag = 'scratch operand']
  #allocation3 [shape = 'f32[2,8,32]{2,1,0:T(8,128)}', space=vmem, size = 0x2000, scoped, tag = 'scratch operand']
  %s0 = inlined_call_operand.vmem [shape: s32[8,8,1], index: 0, kind: input, shape index: {}]
  %s1 = inlined_call_operand.vmem [shape: f32[20,16], index: 1, kind: input, shape index: {}]
  %s2 = inlined_call_operand.vmem [shape: f32[48,128], index: 2, kind: input, shape index: {}]
  %s3 = inlined_call_operand.vmem [shape: f32[1,128], index: 3, kind: input, shape index: {}]
  %s4 = inlined_call_operand.vmem [shape: f32[64,128], index: 4, kind: input, shape index: {}]
  %s5 = inlined_call_operand.vmem [shape: f32[1,128], index: 5, kind: input, shape index: {}]
  %s6 = inlined_call_operand.vmem [shape: f32[2,8,32], index: 6, kind: output, shape index: {0}]
  %s7 = inlined_call_operand.vmem [shape: f32[2,8,32], index: 7, kind: output, shape index: {1}]
  %8 = xla_tuple %s6, %s7
  %s9 = sld [smem:[#allocation0]]
  $region73: #{seq2seq_forward.2} parent=0
    _
  %s11 = ssub.s32 1, %s9
  %s12 = scalar_select 0, %s11, %s9
  loop: start=0, step=1, limit=10
  $region2: #{seq2seq_forward.2} parent=0 // loop_pre_header
    _
  $region3: #{seq2seq_forward.2} parent=0 // loop_header
    %s14 = sphi 0, %s18
    %p15 = scmp.ge.s32.totalorder %s14, 10
    %s24 = sphi 0, %s26
    %s27 = sphi 0, %s24
    %s28 = sphi 0, %s27
    %s44 = sphi 0, %s28
    %s48 = sphi 0, %s48
    %s50 = sphi 0, %s48
    %s51 = sphi 0, %s50
    %s65 = sphi 0, %s51
    %s69 = sphi 0, %s69
    %s71 = sphi 0, %s69
    %s72 = sphi 0, %s71
    %s86 = sphi 0, %s72
    %s90 = sphi 0, %s90
    %s92 = sphi 0, %s90
    %s93 = sphi 0, %s92
    %s107 = sphi 0, %s93
    %s111 = sphi 0, %s111
    %s113 = sphi 0, %s111
    %s114 = sphi 0, %s113
    %s128 = sphi 0, %s114
    %s132 = sphi 0, %s132
    %s134 = sphi 0, %s132
    %s135 = sphi 0, %s134
    %s149 = sphi 0, %s135
    %s153 = sphi 0, %s153
    %s155 = sphi 0, %s153
    %s156 = sphi 0, %s155
    %s170 = sphi 0, %s156
    %s174 = sphi 0, %s174
    %s176 = sphi 0, %s174
    %s177 = sphi 0, %s176
    %s191 = sphi 0, %s177
  $region4: #{seq2seq_forward.2} parent=0 // loop_header_branch
    %17 = sbr.rel (%p15) target = $region8
  $region5: #{seq2seq_forward.2} parent=0 // loop_body
    %s19 = ssub.s32 %s14, 1
    %s20 = ssub.s32 %s14, 2
    %s21 = sadd.s32 %s14, 1
    %s22 = ssub.s32 %s14, %s21
    %p23 = scmp.eq.s32.totalorder %s22, 0
    %s25 = sadd.s32 %s24, 1
    %s26 = scalar_select %p23, %s24, %s25
    %p29 = pneg %p23
    %p30 = scmp.eq.s32.totalorder %s14, 7
    %p31 = por %p29, %p30
    %p32 = scmp.ne.s32.totalorder %s24, %s27
    %p33 = scmp.eq.s32.totalorder %s14, 0
    %p34 = por %p32, %p33
    %p35 = scmp.ne.s32.totalorder %s24, %s27
    %p36 = scmp.eq.s32.totalorder %s19, 7
    %p37 = por %p35, %p36
    %p38 = scmp.ne.s32.totalorder %s27, %s28
    %p39 = scmp.eq.s32.totalorder %s19, 0
    %p40 = por %p38, %p39
    %p41 = scmp.ne.s32.totalorder %s27, %s28
    %p42 = scmp.eq.s32.totalorder %s20, 7
    %p43 = por %p41, %p42
    %p45 = scmp.ne.s32.totalorder %s28, %s44
    %p46 = scmp.eq.s32.totalorder %s20, 0
    %p47 = por %p45, %p46
    %s49 = sadd.s32 %s48, 1
    %p52 = scmp.eq.s32.totalorder %s14, 7
    %p53 = scmp.ne.s32.totalorder %s48, %s50
    %p54 = scmp.eq.s32.totalorder %s14, 0
    %p55 = por %p53, %p54
    %p56 = scmp.ne.s32.totalorder %s48, %s50
    %p57 = scmp.eq.s32.totalorder %s19, 7
    %p58 = por %p56, %p57
    %p59 = scmp.ne.s32.totalorder %s50, %s51
    %p60 = scmp.eq.s32.totalorder %s19, 0
    %p61 = por %p59, %p60
    %p62 = scmp.ne.s32.totalorder %s50, %s51
    %p63 = scmp.eq.s32.totalorder %s20, 7
    %p64 = por %p62, %p63
    %p66 = scmp.ne.s32.totalorder %s51, %s65
    %p67 = scmp.eq.s32.totalorder %s20, 0
    %p68 = por %p66, %p67
    %s70 = sadd.s32 %s69, 1
    %p73 = scmp.eq.s32.totalorder %s14, 7
    %p74 = scmp.ne.s32.totalorder %s69, %s71
    %p75 = scmp.eq.s32.totalorder %s14, 0
    %p76 = por %p74, %p75
    %p77 = scmp.ne.s32.totalorder %s69, %s71
    %p78 = scmp.eq.s32.totalorder %s19, 7
    %p79 = por %p77, %p78
    %p80 = scmp.ne.s32.totalorder %s71, %s72
    %p81 = scmp.eq.s32.totalorder %s19, 0
    %p82 = por %p80, %p81
    %p83 = scmp.ne.s32.totalorder %s71, %s72
    %p84 = scmp.eq.s32.totalorder %s20, 7
    %p85 = por %p83, %p84
    %p87 = scmp.ne.s32.totalorder %s72, %s86
    %p88 = scmp.eq.s32.totalorder %s20, 0
    %p89 = por %p87, %p88
    %s91 = sadd.s32 %s90, 1
    %p94 = scmp.eq.s32.totalorder %s14, 7
    %p95 = scmp.ne.s32.totalorder %s90, %s92
    %p96 = scmp.eq.s32.totalorder %s14, 0
    %p97 = por %p95, %p96
    %p98 = scmp.ne.s32.totalorder %s90, %s92
    %p99 = scmp.eq.s32.totalorder %s19, 7
    %p100 = por %p98, %p99
    %p101 = scmp.ne.s32.totalorder %s92, %s93
    %p102 = scmp.eq.s32.totalorder %s19, 0
    %p103 = por %p101, %p102
    %p104 = scmp.ne.s32.totalorder %s92, %s93
    %p105 = scmp.eq.s32.totalorder %s20, 7
    %p106 = por %p104, %p105
    %p108 = scmp.ne.s32.totalorder %s93, %s107
    %p109 = scmp.eq.s32.totalorder %s20, 0
    %p110 = por %p108, %p109
    %s112 = sadd.s32 %s111, 1
    %p115 = scmp.eq.s32.totalorder %s14, 7
    %p116 = scmp.ne.s32.totalorder %s111, %s113
    %p117 = scmp.eq.s32.totalorder %s14, 0
    %p118 = por %p116, %p117
    %p119 = scmp.ne.s32.totalorder %s111, %s113
    %p120 = scmp.eq.s32.totalorder %s19, 7
    %p121 = por %p119, %p120
    %p122 = scmp.ne.s32.totalorder %s113, %s114
    %p123 = scmp.eq.s32.totalorder %s19, 0
    %p124 = por %p122, %p123
    %p125 = scmp.ne.s32.totalorder %s113, %s114
    %p126 = scmp.eq.s32.totalorder %s20, 7
    %p127 = por %p125, %p126
    %p129 = scmp.ne.s32.totalorder %s114, %s128
    %p130 = scmp.eq.s32.totalorder %s20, 0
    %p131 = por %p129, %p130
    %s133 = sadd.s32 %s132, 1
    %p136 = scmp.eq.s32.totalorder %s14, 7
    %p137 = scmp.ne.s32.totalorder %s132, %s134
    %p138 = scmp.eq.s32.totalorder %s14, 0
    %p139 = por %p137, %p138
    %p140 = scmp.ne.s32.totalorder %s132, %s134
    %p141 = scmp.eq.s32.totalorder %s19, 7
    %p142 = por %p140, %p141
    %p143 = scmp.ne.s32.totalorder %s134, %s135
    %p144 = scmp.eq.s32.totalorder %s19, 0
    %p145 = por %p143, %p144
    %p146 = scmp.ne.s32.totalorder %s134, %s135
    %p147 = scmp.eq.s32.totalorder %s20, 7
    %p148 = por %p146, %p147
    %p150 = scmp.ne.s32.totalorder %s135, %s149
    %p151 = scmp.eq.s32.totalorder %s20, 0
    %p152 = por %p150, %p151
    %s154 = sadd.s32 %s153, 1
    %p157 = scmp.eq.s32.totalorder %s14, 7
    %p158 = scmp.ne.s32.totalorder %s153, %s155
    %p159 = scmp.eq.s32.totalorder %s14, 0
    %p160 = por %p158, %p159
    %p161 = scmp.ne.s32.totalorder %s153, %s155
    %p162 = scmp.eq.s32.totalorder %s19, 7
    %p163 = por %p161, %p162
    %p164 = scmp.ne.s32.totalorder %s155, %s156
    %p165 = scmp.eq.s32.totalorder %s19, 0
    %p166 = por %p164, %p165
    %p167 = scmp.ne.s32.totalorder %s155, %s156
    %p168 = scmp.eq.s32.totalorder %s20, 7
    %p169 = por %p167, %p168
    %p171 = scmp.ne.s32.totalorder %s156, %s170
    %p172 = scmp.eq.s32.totalorder %s20, 0
    %p173 = por %p171, %p172
    %s175 = sadd.s32 %s174, 1
    %p178 = scmp.eq.s32.totalorder %s14, 7
    %p179 = scmp.ne.s32.totalorder %s174, %s176
    %p180 = scmp.eq.s32.totalorder %s14, 0
    %p181 = por %p179, %p180
    %p182 = scmp.ne.s32.totalorder %s174, %s176
    %p183 = scmp.eq.s32.totalorder %s19, 7
    %p184 = por %p182, %p183
    %p185 = scmp.ne.s32.totalorder %s176, %s177
    %p186 = scmp.eq.s32.totalorder %s19, 0
    %p187 = por %p185, %p186
    %p188 = scmp.ne.s32.totalorder %s176, %s177
    %p189 = scmp.eq.s32.totalorder %s20, 7
    %p190 = por %p188, %p189
    %p192 = scmp.ne.s32.totalorder %s177, %s191
    %p193 = scmp.eq.s32.totalorder %s20, 0
    %p194 = por %p192, %p193
    %p195 = scmp.le.s32.totalorder 1, %s14
    %p196 = scmp.lt.s32.totalorder %s14, 9
    %p197 = pnand %p195, %p196
    %p198 = pneg %p197
    // Predicated region
    $region9: #{seq2seq_forward.2} parent=5 // pred_check
      _
    $region10: #{seq2seq_forward.2} parent=5 // pred_check_branch
      %200 = sbr.rel (%p197) target = $region12
    $region11: #{seq2seq_forward.2} parent=5 // pred_region
      %s201 = ssub.s32 %s14, 1
      // Predicated region
      $region13: #{seq2seq_forward.2} parent=11 // pred_check
        %p202 = pneg %p61
      $region14: #{seq2seq_forward.2} parent=11 // pred_check_branch
        %204 = sbr.rel (%p202) target = $region16
      $region15: #{seq2seq_forward.2} parent=11 // pred_region
        _
      $region16: #{seq2seq_forward.2} parent=11 // pred_fallthru
        _
      // Predicated region
      $region17: #{seq2seq_forward.2} parent=11 // pred_check
        %p205 = pneg %p82
      $region18: #{seq2seq_forward.2} parent=11 // pred_check_branch
        %207 = sbr.rel (%p205) target = $region20
      $region19: #{seq2seq_forward.2} parent=11 // pred_region
        _
      $region20: #{seq2seq_forward.2} parent=11 // pred_fallthru
        _
      // Predicated region
      $region21: #{seq2seq_forward.2} parent=11 // pred_check
        %p208 = pneg %p103
      $region22: #{seq2seq_forward.2} parent=11 // pred_check_branch
        %210 = sbr.rel (%p208) target = $region24
      $region23: #{seq2seq_forward.2} parent=11 // pred_region
        _
      $region24: #{seq2seq_forward.2} parent=11 // pred_fallthru
        _
      // Predicated region
      $region25: #{seq2seq_forward.2} parent=11 // pred_check
        %p211 = pneg %p124
      $region26: #{seq2seq_forward.2} parent=11 // pred_check_branch
        %213 = sbr.rel (%p211) target = $region28
      $region27: #{seq2seq_forward.2} parent=11 // pred_region
        _
      $region28: #{seq2seq_forward.2} parent=11 // pred_fallthru
        _
      // Predicated region
      $region29: #{seq2seq_forward.2} parent=11 // pred_check
        %p214 = pneg %p145
      $region30: #{seq2seq_forward.2} parent=11 // pred_check_branch
        %216 = sbr.rel (%p214) target = $region32
      $region31: #{seq2seq_forward.2} parent=11 // pred_region
        _
      $region32: #{seq2seq_forward.2} parent=11 // pred_fallthru
        _
    $region12: #{seq2seq_forward.2} parent=5 // pred_fallthru
      _
    %p217 = scmp.lt.s32.totalorder %s14, 8
    // Predicated region
    $region33: #{seq2seq_forward.2} parent=5 // pred_check
      %p218 = pneg %p217
    $region34: #{seq2seq_forward.2} parent=5 // pred_check_branch
      %220 = sbr.rel (%p218) target = $region36
    $region35: #{seq2seq_forward.2} parent=5 // pred_region
      // Predicated region
      $region37: #{seq2seq_forward.2} parent=35 // pred_check
        %p221 = pneg %p34
      $region38: #{seq2seq_forward.2} parent=35 // pred_check_branch
        %223 = sbr.rel (%p221) target = $region40
      $region39: #{seq2seq_forward.2} parent=35 // pred_region
        %p224 = scmp.lt.s32.totalorder %s14, 7
        %s225 = scalar_select %p224, %s14, 7
        %s226 = smul.addr %s225, 8
        %s227 = scalar_lea.vmem %s0, %s226
      $region40: #{seq2seq_forward.2} parent=35 // pred_fallthru
        _
    $region36: #{seq2seq_forward.2} parent=5 // pred_fallthru
      _
    %p228 = scmp.le.s32.totalorder 1, %s14
    %p229 = scmp.lt.s32.totalorder %s14, 9
    %p230 = pnand %p228, %p229
    %p231 = pneg %p230
    // Predicated region
    $region41: #{seq2seq_forward.2} parent=5 // pred_check
      _
    $region42: #{seq2seq_forward.2} parent=5 // pred_check_branch
      %233 = sbr.rel (%p230) target = $region44
    $region43: #{seq2seq_forward.2} parent=5 // pred_region
      %s234 = ssub.s32 %s14, 1
      %p235 = scmp.lt.s32.totalorder %s19, 7
      %s236 = scalar_select %p235, %s19, 7
      %s237 = smul.addr %s236, 8
      %s238 = scalar_lea.vmem %s0, %s237
      %p239 = pneg %p40
      %p240 = pneg %p37
      %p241 = pneg %p61
      %p242 = pneg %p58
      %p243 = pneg %p82
      %p244 = pneg %p79
      %p245 = pneg %p103
      %p246 = pneg %p100
      %p247 = pneg %p124
      %p248 = pneg %p121
      %p249 = pneg %p145
      %p250 = pneg %p142
      %p251 = pneg %p166
      %p252 = pneg %p163
      %p253 = pneg %p187
      %p254 = pneg %p184
      %p255 = scmp.lt.s32.totalorder %s19, 7
      %s256 = scalar_select %p255, %s19, 7
      %s257 = smul.addr %s256, 8
      %s258 = scalar_lea.vmem %s0, %s257
      %p259 = scmp.eq.s32.totalorder %s19, 0
      // Predicated region
      $region45: #{seq2seq_forward.2} parent=43 // pred_check
        %p260 = pneg %p259
      $region46: #{seq2seq_forward.2} parent=43 // pred_check_branch
        %262 = sbr.rel (%p260) target = $region48
      $region47: #{seq2seq_forward.2} parent=43 // pred_region
        %vm263 = vcmask 261120
        %264 = vst.msk [vmem:[#allocation2] sm:$0xff] %vm263, 0.0
        %265 = vst.msk [vmem:[#allocation2 + $0x8] sm:$0xff] %vm263, 0.0
        %266 = vst.msk [vmem:[#allocation3] sm:$0xff] %vm263, 0.0
        %267 = vst.msk [vmem:[#allocation3 + $0x8] sm:$0xff] %vm263, 0.0
      $region48: #{seq2seq_forward.2} parent=43 // pred_fallthru
        _
      %v268 = vld [vmem:[%s258] sm:$0xff]
      %v269 = vlaneseq
      %v270 = vand.u32 %v269, 127
      %271 = vset.pattern.permute.xlu0 0
      %272 = vperm.xlu0 %271, %v268
      %v273 = vpop.permute.xlu0 %272
      %vm274 = vcmp.eq.s32.totalorder %v270, %v273
      %v275 = vsel %vm274, 1, 0
      %v276 = vcvt.s32.f32 %v275
      %v277 = vld [vmem:[%s1] sm:$0xff]
      %v278 = vld [vmem:[%s1 + $0x8] sm:$0xff]
      %v279 = vld [vmem:[%s1 + $0x10] sm:$0xf]
      %vm280 = vcmask 162816
      %v282 = vsel %vm280, %v276, 0
      %vm284 = vcmask 1043456
      %v286 = vsel %vm284, %v279, 0
      %288 = vmatprep.subr.mxu0 0.0
      %289 = vmatpush1.msra.mxu0 0.0
      %290 = vmatprep.subr.mxu0 0.0
      %291 = vmatpush1.msra.mxu0 0.0
      %292 = vmatprep.subr.mxu0 0.0
      %293 = vmatpush1.msra.mxu0 0.0
      %294 = vmatprep.subr.mxu0 0.0
      %295 = vmatpush1.msra.mxu0 0.0
      %296 = vmatprep.subr.mxu0 0.0
      %297 = vmatpush1.msra.mxu0 0.0
      %298 = vmatprep.subr.mxu0 0.0
      %299 = vmatpush1.msra.mxu0 0.0
      %300 = vmatprep.subr.mxu0 0.0
      %301 = vmatpush1.msra.mxu0 0.0
      %302 = vmatprep.subr.mxu0 0.0
      %303 = vmatpush1.msra.mxu0 0.0
      %304 = vmatprep.subr.mxu0 0.0
      %305 = vmatpush1.msra.mxu0 0.0
      %306 = vmatprep.subr.mxu0 0.0
      %307 = vmatpush1.msra.mxu0 0.0
      %308 = vmatprep.subr.mxu0 0.0
      %309 = vmatpush1.msra.mxu0 0.0
      %310 = vmatprep.subr.mxu0 0.0
      %311 = vmatpush1.msra.mxu0 0.0
      %312 = vmatprep.subr.mxu0 0.0
      %313 = vmatpush1.msra.mxu0 0.0
      %314 = vmatprep.subr.mxu0 0.0
      %315 = vmatpush1.msra.mxu0 %v286
      %316 = vmatprep.subr.mxu0 0.0
      %317 = vmatpush1.msra.mxu0 %v278
      %318 = vmatprep.subr.mxu0 0.0
      %319 = vmatpush1.msra.mxu0 %v277
      %320 = vmatprep.subr.mxu0 0.0
      %321 = vmatpush2.msra.mxu0 0.0
      %322 = vmatprep.subr.mxu0 0.0
      %323 = vmatpush2.msra.mxu0 0.0
      %324 = vmatprep.subr.mxu0 0.0
      %325 = vmatpush2.msra.mxu0 0.0
      %326 = vmatprep.subr.mxu0 0.0
      %327 = vmatpush2.msra.mxu0 0.0
      %328 = vmatprep.subr.mxu0 0.0
      %329 = vmatpush2.msra.mxu0 0.0
      %330 = vmatprep.subr.mxu0 0.0
      %331 = vmatpush2.msra.mxu0 0.0
      %332 = vmatprep.subr.mxu0 0.0
      %333 = vmatpush2.msra.mxu0 0.0
      %334 = vmatprep.subr.mxu0 0.0
      %335 = vmatpush2.msra.mxu0 0.0
      %336 = vmatprep.subr.mxu0 0.0
      %337 = vmatpush2.msra.mxu0 0.0
      %338 = vmatprep.subr.mxu0 0.0
      %339 = vmatpush2.msra.mxu0 0.0
      %340 = vmatprep.subr.mxu0 0.0
      %341 = vmatpush2.msra.mxu0 0.0
      %342 = vmatprep.subr.mxu0 0.0
      %343 = vmatpush2.msra.mxu0 0.0
      %344 = vmatprep.subr.mxu0 0.0
      %345 = vmatpush2.msra.mxu0 0.0
      %346 = vmatprep.subr.mxu0 0.0
      %347 = vmatpush2.msra.mxu0 0.0
      %348 = vmatprep.subr.mxu0 0.0
      %349 = vmatpush2.msra.mxu0 0.0
      %350 = vmatprep.subr.mxu0 0.0
      %351 = vmatpush2.msra.mxu0 0.0
      %352 = vmatprep.mubr.f32.mxu0 0.0
      %353 = vmatmul.mubr.f32.gmra.mxu0 %v282
      %v354 = vpop.f32.mrf.mxu0
      %v355 = vadd.f32 0.0, %v354
      %v356 = vpop.f32.mrf.mxu0
      %357 = vdwg.mxu0
      %v358 = vld [vmem:[#allocation2] sm:$0xff]
      %v359 = vld [vmem:[#allocation3] sm:$0xff]
      %v360 = vld [vmem:[%s2] sm:$0xff]
      %v361 = vld [vmem:[%s2 + $0x8] sm:$0xff]
      %v362 = vld [vmem:[%s2 + $0x10] sm:$0xff]
      %v363 = vld [vmem:[%s2 + $0x18] sm:$0xff]
      %v364 = vld [vmem:[%s2 + $0x20] sm:$0xff]
      %v365 = vld [vmem:[%s2 + $0x28] sm:$0xff]
      %v366 = vld [vmem:[%s3] sm:$0x1]
      %368 = vrot.lane.b32.xlu0 %v358, 16
      %v369 = vpop.permute.xlu0 %368
      %vm371 = vcmask 130048
      %v372 = vsel %vm371, %v355, %v369
      %v374 = vlaneseq
      %v375 = vshrl.u32 %v374, 7
      %v376 = vsub.s32 0, %v375
      %v377 = vrot.slane %v366, %v376
      %vm379 = vcmask 392192
      %v381 = vsel %vm379, %v372, 0
      %383 = vmatprep.subr.mxu0 0.0
      %384 = vmatpush1.msra.mxu0 0.0
      %385 = vmatprep.subr.mxu0 0.0
      %386 = vmatpush1.msra.mxu0 0.0
      %387 = vmatprep.subr.mxu0 0.0
      %388 = vmatpush1.msra.mxu0 0.0
      %389 = vmatprep.subr.mxu0 0.0
      %390 = vmatpush1.msra.mxu0 0.0
      %391 = vmatprep.subr.mxu0 0.0
      %392 = vmatpush1.msra.mxu0 0.0
      %393 = vmatprep.subr.mxu0 0.0
      %394 = vmatpush1.msra.mxu0 0.0
      %395 = vmatprep.subr.mxu0 0.0
      %396 = vmatpush1.msra.mxu0 0.0
      %397 = vmatprep.subr.mxu0 0.0
      %398 = vmatpush1.msra.mxu0 0.0
      %399 = vmatprep.subr.mxu0 0.0
      %400 = vmatpush1.msra.mxu0 0.0
      %401 = vmatprep.subr.mxu0 0.0
      %402 = vmatpush1.msra.mxu0 0.0
      %403 = vmatprep.subr.mxu0 0.0
      %404 = vmatpush1.msra.mxu0 %v365
      %405 = vmatprep.subr.mxu0 0.0
      %406 = vmatpush1.msra.mxu0 %v364
      %407 = vmatprep.subr.mxu0 0.0
      %408 = vmatpush1.msra.mxu0 %v363
      %409 = vmatprep.subr.mxu0 0.0
      %410 = vmatpush1.msra.mxu0 %v362
      %411 = vmatprep.subr.mxu0 0.0
      %412 = vmatpush1.msra.mxu0 %v361
      %413 = vmatprep.subr.mxu0 0.0
      %414 = vmatpush1.msra.mxu0 %v360
      %415 = vmatprep.subr.mxu0 0.0
      %416 = vmatpush2.msra.mxu0 0.0
      %417 = vmatprep.subr.mxu0 0.0
      %418 = vmatpush2.msra.mxu0 0.0
      %419 = vmatprep.subr.mxu0 0.0
      %420 = vmatpush2.msra.mxu0 0.0
      %421 = vmatprep.subr.mxu0 0.0
      %422 = vmatpush2.msra.mxu0 0.0
      %423 = vmatprep.subr.mxu0 0.0
      %424 = vmatpush2.msra.mxu0 0.0
      %425 = vmatprep.subr.mxu0 0.0
      %426 = vmatpush2.msra.mxu0 0.0
      %427 = vmatprep.subr.mxu0 0.0
      %428 = vmatpush2.msra.mxu0 0.0
      %429 = vmatprep.subr.mxu0 0.0
      %430 = vmatpush2.msra.mxu0 0.0
      %431 = vmatprep.subr.mxu0 0.0
      %432 = vmatpush2.msra.mxu0 0.0
      %433 = vmatprep.subr.mxu0 0.0
      %434 = vmatpush2.msra.mxu0 0.0
      %435 = vmatprep.subr.mxu0 0.0
      %436 = vmatpush2.msra.mxu0 0.0
      %437 = vmatprep.subr.mxu0 0.0
      %438 = vmatpush2.msra.mxu0 0.0
      %439 = vmatprep.subr.mxu0 0.0
      %440 = vmatpush2.msra.mxu0 0.0
      %441 = vmatprep.subr.mxu0 0.0
      %442 = vmatpush2.msra.mxu0 0.0
      %443 = vmatprep.subr.mxu0 0.0
      %444 = vmatpush2.msra.mxu0 0.0
      %445 = vmatprep.subr.mxu0 0.0
      %446 = vmatpush2.msra.mxu0 0.0
      %447 = vmatprep.mubr.f32.mxu0 0.0
      %448 = vmatmul.mubr.f32.gmra.mxu0 %v381
      %v449 = vpop.f32.mrf.mxu0
      %v450 = vadd.f32 %v377, %v449
      %v451 = vpop.f32.mrf.mxu0
      %452 = vdwg.mxu0
      %v453 = vxor.u32 %v450, 2147483648
      %v454 = vmul.f32 %v453, 1.442695
      %v455 = vpow.pop %v454
      %v456 = vadd.f32 %v455, 1.0
      %v457 = vrcp.pop %v456
      %v458 = vmul.f32 1.0, %v457
      %v459 = vtanh.pop %v450
      %461 = vrot.lane.b32.xlu0 %v359, 32
      %v462 = vpop.permute.xlu0 %461
      %v464 = vmul.f32 %v458, %v462
      %466 = vrot.lane.b32.xlu0 %v459, 64
      %v467 = vpop.permute.xlu0 %466
      %v469 = vmul.f32 %v458, %v467
      %471 = vrot.lane.b32.xlu0 %v469, 32
      %v472 = vpop.permute.xlu0 %471
      %v474 = vadd.f32 %v464, %v472
      %v475 = vtanh.pop %v474
      %477 = vrot.lane.b32.xlu0 %v475, 64
      %v478 = vpop.permute.xlu0 %477
      %v480 = vmul.f32 %v458, %v478
      %482 = vrot.lane.b32.xlu0 %v480, 32
      %v483 = vpop.permute.xlu0 %482
      %vm485 = vcmask 261120
      %486 = vst.msk [vmem:[#allocation2] sm:$0xff] %vm485, %v483
      %488 = vrot.lane.b32.xlu0 %v474, 96
      %v489 = vpop.permute.xlu0 %488
      %491 = vst.msk [vmem:[#allocation3] sm:$0xff] %vm485, %v489
      %s492 = scalar_lea.vmem [#allocation2], 8
      %v493 = vld [vmem:[%s492] sm:$0xff]
      %s494 = scalar_lea.vmem [#allocation3], 8
      %v495 = vld [vmem:[%s494] sm:$0xff]
      %v496 = vld [vmem:[%s4] sm:$0xff]
      %v497 = vld [vmem:[%s4 + $0x8] sm:$0xff]
      %v498 = vld [vmem:[%s4 + $0x10] sm:$0xff]
      %v499 = vld [vmem:[%s4 + $0x18] sm:$0xff]
      %v500 = vld [vmem:[%s4 + $0x20] sm:$0xff]
      %v501 = vld [vmem:[%s4 + $0x28] sm:$0xff]
      %v502 = vld [vmem:[%s4 + $0x30] sm:$0xff]
      %v503 = vld [vmem:[%s4 + $0x38] sm:$0xff]
      %v504 = vld [vmem:[%s5] sm:$0x1]
      %506 = vrot.lane.b32.xlu0 %v493, 32
      %v507 = vpop.permute.xlu0 %506
      %v509 = vsel %vm485, %v483, %v507
      %v511 = vlaneseq
      %v512 = vshrl.u32 %v511, 7
      %v513 = vsub.s32 0, %v512
      %v514 = vrot.slane %v504, %v513
      %vm516 = vcmask 523264
      %v518 = vsel %vm516, %v509, 0
      %520 = vmatprep.subr.mxu0 0.0
      %521 = vmatpush1.msra.mxu0 0.0
      %522 = vmatprep.subr.mxu0 0.0
      %523 = vmatpush1.msra.mxu0 0.0
      %524 = vmatprep.subr.mxu0 0.0
      %525 = vmatpush1.msra.mxu0 0.0
      %526 = vmatprep.subr.mxu0 0.0
      %527 = vmatpush1.msra.mxu0 0.0
      %528 = vmatprep.subr.mxu0 0.0
      %529 = vmatpush1.msra.mxu0 0.0
      %530 = vmatprep.subr.mxu0 0.0
      %531 = vmatpush1.msra.mxu0 0.0
      %532 = vmatprep.subr.mxu0 0.0
      %533 = vmatpush1.msra.mxu0 0.0
      %534 = vmatprep.subr.mxu0 0.0
      %535 = vmatpush1.msra.mxu0 0.0
      %536 = vmatprep.subr.mxu0 0.0
      %537 = vmatpush1.msra.mxu0 %v503
      %538 = vmatprep.subr.mxu0 0.0
      %539 = vmatpush1.msra.mxu0 %v502
      %540 = vmatprep.subr.mxu0 0.0
      %541 = vmatpush1.msra.mxu0 %v501
      %542 = vmatprep.subr.mxu0 0.0
      %543 = vmatpush1.msra.mxu0 %v500
      %544 = vmatprep.subr.mxu0 0.0
      %545 = vmatpush1.msra.mxu0 %v499
      %546 = vmatprep.subr.mxu0 0.0
      %547 = vmatpush1.msra.mxu0 %v498
      %548 = vmatprep.subr.mxu0 0.0
      %549 = vmatpush1.msra.mxu0 %v497
      %550 = vmatprep.subr.mxu0 0.0
      %551 = vmatpush1.msra.mxu0 %v496
      %552 = vmatprep.subr.mxu0 0.0
      %553 = vmatpush2.msra.mxu0 0.0
      %554 = vmatprep.subr.mxu0 0.0
      %555 = vmatpush2.msra.mxu0 0.0
      %556 = vmatprep.subr.mxu0 0.0
      %557 = vmatpush2.msra.mxu0 0.0
      %558 = vmatprep.subr.mxu0 0.0
      %559 = vmatpush2.msra.mxu0 0.0
      %560 = vmatprep.subr.mxu0 0.0
      %561 = vmatpush2.msra.mxu0 0.0
      %562 = vmatprep.subr.mxu0 0.0
      %563 = vmatpush2.msra.mxu0 0.0
      %564 = vmatprep.subr.mxu0 0.0
      %565 = vmatpush2.msra.mxu0 0.0
      %566 = vmatprep.subr.mxu0 0.0
      %567 = vmatpush2.msra.mxu0 0.0
      %568 = vmatprep.subr.mxu0 0.0
      %569 = vmatpush2.msra.mxu0 0.0
      %570 = vmatprep.subr.mxu0 0.0
      %571 = vmatpush2.msra.mxu0 0.0
      %572 = vmatprep.subr.mxu0 0.0
      %573 = vmatpush2.msra.mxu0 0.0
      %574 = vmatprep.subr.mxu0 0.0
      %575 = vmatpush2.msra.mxu0 0.0
      %576 = vmatprep.subr.mxu0 0.0
      %577 = vmatpush2.msra.mxu0 0.0
      %578 = vmatprep.subr.mxu0 0.0
      %579 = vmatpush2.msra.mxu0 0.0
      %580 = vmatprep.subr.mxu0 0.0
      %581 = vmatpush2.msra.mxu0 0.0
      %582 = vmatprep.subr.mxu0 0.0
      %583 = vmatpush2.msra.mxu0 0.0
      %584 = vmatprep.mubr.f32.mxu0 0.0
      %585 = vmatmul.mubr.f32.gmra.mxu0 %v518
      %v586 = vpop.f32.mrf.mxu0
      %v587 = vadd.f32 %v514, %v586
      %v588 = vpop.f32.mrf.mxu0
      %589 = vdwg.mxu0
      %v590 = vxor.u32 %v587, 2147483648
      %v591 = vmul.f32 %v590, 1.442695
      %v592 = vpow.pop %v591
      %v593 = vadd.f32 %v592, 1.0
      %v594 = vrcp.pop %v593
      %v595 = vmul.f32 1.0, %v594
      %v596 = vtanh.pop %v587
      %598 = vrot.lane.b32.xlu0 %v495, 32
      %v599 = vpop.permute.xlu0 %598
      %v601 = vmul.f32 %v595, %v599
      %603 = vrot.lane.b32.xlu0 %v596, 64
      %v604 = vpop.permute.xlu0 %603
      %v606 = vmul.f32 %v595, %v604
      %608 = vrot.lane.b32.xlu0 %v606, 32
      %v609 = vpop.permute.xlu0 %608
      %v611 = vadd.f32 %v601, %v609
      %v612 = vtanh.pop %v611
      %614 = vrot.lane.b32.xlu0 %v612, 64
      %v615 = vpop.permute.xlu0 %614
      %v617 = vmul.f32 %v595, %v615
      %619 = vrot.lane.b32.xlu0 %v617, 32
      %v620 = vpop.permute.xlu0 %619
      %622 = vst.msk [vmem:[%s492] sm:$0xff] %vm485, %v620
      %624 = vrot.lane.b32.xlu0 %v611, 96
      %v625 = vpop.permute.xlu0 %624
      %627 = vst.msk [vmem:[%s494] sm:$0xff] %vm485, %v625
      %p628 = scmp.eq.s32.totalorder %s19, 7
      // Predicated region
      $region49: #{seq2seq_forward.2} parent=43 // pred_check
        %p629 = pneg %p628
      $region50: #{seq2seq_forward.2} parent=43 // pred_check_branch
        %631 = sbr.rel (%p629) target = $region52
      $region51: #{seq2seq_forward.2} parent=43 // pred_region
        %v632 = vld [vmem:[#allocation2] sm:$0xff]
        %v633 = vld [vmem:[#allocation2 + $0x8] sm:$0xff]
        %634 = vst.msk [vmem:[%s6] sm:$0xff] %vm485, %v632
        %635 = vst.msk [vmem:[%s6 + $0x8] sm:$0xff] %vm485, %v633
        %v636 = vld [vmem:[#allocation3] sm:$0xff]
        %v637 = vld [vmem:[#allocation3 + $0x8] sm:$0xff]
        %638 = vst.msk [vmem:[%s7] sm:$0xff] %vm485, %v636
        %639 = vst.msk [vmem:[%s7 + $0x8] sm:$0xff] %vm485, %v637
      $region52: #{seq2seq_forward.2} parent=43 // pred_fallthru
        _
      // Predicated region
      $region53: #{seq2seq_forward.2} parent=43 // pred_check
        %p640 = pneg %p163
      $region54: #{seq2seq_forward.2} parent=43 // pred_check_branch
        %642 = sbr.rel (%p640) target = $region56
      $region55: #{seq2seq_forward.2} parent=43 // pred_region
        _
      $region56: #{seq2seq_forward.2} parent=43 // pred_fallthru
        _
      // Predicated region
      $region57: #{seq2seq_forward.2} parent=43 // pred_check
        %p643 = pneg %p184
      $region58: #{seq2seq_forward.2} parent=43 // pred_check_branch
        %645 = sbr.rel (%p643) target = $region60
      $region59: #{seq2seq_forward.2} parent=43 // pred_region
        _
      $region60: #{seq2seq_forward.2} parent=43 // pred_fallthru
        _
      // Predicated region
      $region61: #{seq2seq_forward.2} parent=43 // pred_check
        %p646 = pneg %p163
      $region62: #{seq2seq_forward.2} parent=43 // pred_check_branch
        %648 = sbr.rel (%p646) target = $region64
      $region63: #{seq2seq_forward.2} parent=43 // pred_region
        _
      $region64: #{seq2seq_forward.2} parent=43 // pred_fallthru
        _
      // Predicated region
      $region65: #{seq2seq_forward.2} parent=43 // pred_check
        %p649 = pneg %p184
      $region66: #{seq2seq_forward.2} parent=43 // pred_check_branch
        %651 = sbr.rel (%p649) target = $region68
      $region67: #{seq2seq_forward.2} parent=43 // pred_region
        _
      $region68: #{seq2seq_forward.2} parent=43 // pred_fallthru
        _
    $region44: #{seq2seq_forward.2} parent=5 // pred_fallthru
      _
    %p652 = scmp.le.s32.totalorder 2, %s14
    // Predicated region
    $region69: #{seq2seq_forward.2} parent=5 // pred_check
      %p653 = pneg %p652
    $region70: #{seq2seq_forward.2} parent=5 // pred_check_branch
      %655 = sbr.rel (%p653) target = $region72
    $region71: #{seq2seq_forward.2} parent=5 // pred_region
      %s656 = ssub.s32 %s14, 2
    $region72: #{seq2seq_forward.2} parent=5 // pred_fallthru
      _
  $region6: #{seq2seq_forward.2} parent=0 // loop_footer
    %s18 = sadd.s32 1, %s14
  $region7: #{seq2seq_forward.2} parent=0 // loop_footer_branch
    %13 = sbr.rel target = $region3
  $region8: #{seq2seq_forward.2} parent=0 // loop_exit
    _

</llo_original>
